<compile_context>
chip_gen: v7x
topology: tpu7x:2x2x1
jax: 0.10.0
libtpu: 0.0.40
codegen_flags: <defaults>
</compile_context>

<pallas_src>
import functools

import jax
import jax.numpy as jnp
from jax import lax
from jax.experimental import pallas as pl
from jax.experimental.pallas import tpu as pltpu

HEADS = 2            # LANTModelBK.heads
NEG_SLOPE = 0.2      # GATConv LeakyReLU default

NODE_TYPES = ("a", "b")
EDGE_TYPES = (("a", "to", "b"), ("b", "to", "a"))
ET_AB, ET_BA = EDGE_TYPES

_VMEM = pl.BlockSpec(memory_space=pltpu.MemorySpace.VMEM)


# ------------------------------ fused kernel ------------------------------

def _fused_kernel(xa_ref, xb_ref, adj_ab_ref, adj_ba_ref,
                  lwa_ref, lwb_ref, wsab_ref, wsba_ref, fold_ref, small_ref,
                  out_ref, summ_ref, *, na, nb, npad, hidden, heads):
    c = hidden // heads
    f32 = jnp.float32
    bf16 = jnp.bfloat16

    def mm(a, b):
        # bf16 MXU operands, f32 accumulation (v6e/v7x fast path, fine on v5e).
        return jnp.dot(a.astype(bf16), b.astype(bf16),
                       preferred_element_type=f32)

    # ---- packed tiny parameters ----
    lin_b_a = small_ref[0:1, :]
    lin_b_b = small_ref[1:2, :]
    prelu_a = small_ref[2:3, :]
    prelu_b = small_ref[3:4, :]
    bias_ab = small_ref[4:5, :]
    bias_ba = small_ref[5:6, :]
    att_ab_t = small_ref[6:6 + heads, :]                   # [H, HC] block-diag fold
    att_ba_t = small_ref[6 + heads:6 + 2 * heads, :]       # [H, HC]
    wdf_ab = fold_ref[:, 0:heads]                          # [hidden, H]
    wdf_ba = fold_ref[:, heads:2 * heads]                  # [hidden, H]

    # ---- node_lin on the [clean ; corrupted] row-stacked inputs ----
    # (permutation commutes with the row-wise linear -> exact corruption)
    haa = mm(xa_ref[...], lwa_ref[...]) + lin_b_a          # [2*Npad, hidden]
    hbb = mm(xb_ref[...], lwb_ref[...]) + lin_b_b          # [2*Npad, hidden]

    # ---- per edge type: one stacked src projection + one stacked dst fold ----
    xs_ab = mm(haa, wsab_ref[...])                         # [2*Npad, HC]   (a->b src)
    xs_ba = mm(hbb, wsba_ref[...])                         # [2*Npad, HC]   (b->a src)
    ad_ab = mm(hbb, wdf_ab)                                # [2*Npad, H]    (a->b dst)
    ad_ba = mm(haa, wdf_ba)                                # [2*Npad, H]    (b->a dst)

    col = lax.broadcasted_iota(jnp.int32, (1, hidden), 1)
    adj_ab = adj_ab_ref[...]
    adj_ba = adj_ba_ref[...]

    def gat_prelu(xs, a_dst, adj, att_src_t, bias, prelu_w):
        # GATConv((-1,-1), c, heads=H, add_self_loops=False, concat=True)
        # followed by PReLU(hidden) of the destination node type.
        # all-head src attention logits in one dot (folded att vectors)
        a_src = lax.dot_general(att_src_t.astype(bf16), xs.astype(bf16),
                                (((1,), (1,)), ((), ())),
                                preferred_element_type=f32)   # [H, Ns]
        out = jnp.zeros((npad, hidden), f32)
        for h in range(heads):                                # static unroll
            logits = a_dst[:, h:h + 1] + a_src[h:h + 1, :]    # [Nd, Ns]
            logits = jnp.where(logits > 0, logits, NEG_SLOPE * logits)
            masked = jnp.where(adj > 0, logits, -1e30)        # f32 logits
            m = jnp.max(masked, axis=1, keepdims=True)
            e = jnp.where(adj > 0, jnp.exp(masked - m), 0.0)
            denom = jnp.sum(e, axis=1, keepdims=True)
            # isolated dst rows: clamped denom -> zero messages (no NaN);
            # PyG would emit no message, output is then just bias+PReLU.
            attn = e * pl.reciprocal(jnp.maximum(denom, 1e-16), approx=True)
            msg = mm(attn, xs)                                # [Nd, HC]
            head_mask = (col >= h * c) & (col < (h + 1) * c)
            out = jnp.where(head_mask, msg, out)              # no lane concat
        out = out + bias
        return jnp.where(out >= 0.0, out, prelu_w * out)      # PReLU

    # to_hetero(LANT): one GATConv per edge type; exactly one incoming edge
    # type per node type here, so the sum aggregation over relations is a no-op.
    pos_b = gat_prelu(xs_ab[0:npad], ad_ab[0:npad], adj_ab,
                      att_ab_t, bias_ab, prelu_b)
    neg_b = gat_prelu(xs_ab[npad:2 * npad], ad_ab[npad:2 * npad], adj_ab,
                      att_ab_t, bias_ab, prelu_b)
    pos_a = gat_prelu(xs_ba[0:npad], ad_ba[0:npad], adj_ba,
                      att_ba_t, bias_ba, prelu_a)
    neg_a = gat_prelu(xs_ba[npad:2 * npad], ad_ba[npad:2 * npad], adj_ba,
                      att_ba_t, bias_ba, prelu_a)

    # lane-dense output slab, single unmasked full-width store:
    # cols [pos_a | pos_b | neg_a | neg_b]
    out_ref[...] = jnp.concatenate([pos_a, pos_b, neg_a, neg_b], axis=1)

    # DGI summary on the positive embeddings (padded rows masked out):
    # sigmoid(mean over node types of per-type means).
    row = lax.broadcasted_iota(jnp.int32, (npad, 1), 0)
    wa = jnp.where(row < na, 1.0 / na, 0.0)
    wb = jnp.where(row < nb, 1.0 / nb, 0.0)
    s = 0.5 * (jnp.sum(pos_a * wa, axis=0, keepdims=True)
               + jnp.sum(pos_b * wb, axis=0, keepdims=True))
    summ_ref[...] = 1.0 / (1.0 + jnp.exp(-s))


# ------------------------------ model glue ------------------------------

def glorot(key, shape):
    fan_in, fan_out = shape[-2], shape[-1]
    lim = (6.0 / (fan_in + fan_out)) ** 0.5
    return jax.random.uniform(key, shape, jnp.float32, -lim, lim)


def init_params(key, hidden_channels, feat_dims):
    heads = HEADS
    c = hidden_channels // heads          # per-head channels (LANT hidden)
    hc = c * heads                        # == hidden_channels after concat
    eye = jnp.eye(heads, dtype=jnp.float32)
    params = {"lin": {}, "prelu": {}, "conv": {}}
    for t in NODE_TYPES:
        key, k1, k2 = jax.random.split(key, 3)
        params["lin"][t] = {
            "w": glorot(k1, (feat_dims[t], hidden_channels)),
            "b": jax.random.uniform(k2, (1, hidden_channels), jnp.float32,
                                    -0.1, 0.1),
        }
        params["prelu"][t] = jnp.full((1, hc), 0.25, jnp.float32)  # PReLU init
    for et in EDGE_TYPES:
        key, k1, k2, k3, k4 = jax.random.split(key, 5)
        w_src = glorot(k1, (hidden_channels, hc))
        w_dst = glorot(k2, (hidden_channels, hc))
        att_src = glorot(k3, (heads, c))
        att_dst = glorot(k4, (heads, c))
        # fold the attention vectors at init time:
        #   a_src = att_src_blk_t @ xs^T   (block-diagonal over heads)
        att_src_blk = (att_src[:, :, None] * eye[:, None, :]).reshape(hc, heads)
        att_src_blk_t = att_src_blk.T                         # [H, HC]
        #   a_dst = x_dst @ w_dst_fold, w_dst_fold[:,h] = w_dst[:,hC:(h+1)C] @ att_dst[h]
        w_dst_fold = jnp.einsum(
            "dhc,hc->dh", w_dst.reshape(hidden_channels, heads, c), att_dst)
        params["conv"][et] = {
            "w_src": w_src,
            "att_src_blk_t": att_src_blk_t,
            "w_dst_fold": w_dst_fold,
            "bias": jnp.zeros((1, hc), jnp.float32),
        }
    return params


@jax.jit
def lant_model_forward(params, x_raw, adj, key):
    heads = HEADS
    hidden = params["lin"][NODE_TYPES[0]]["w"].shape[1]
    xa, xb = x_raw["a"], x_raw["b"]
    na, nb = xa.shape[0], xb.shape[0]
    npad = -(-max(na, nb) // 8) * 8

    # corruption(): per-type row permutation of the raw features (equivalent
    # to permuting the projected x_dict since node_lin is row-wise), stacked
    # [clean ; corrupted] along sublanes so the kernel projects both at once.
    ka, kb = jax.random.split(key)
    perm_a = jax.random.permutation(ka, na)
    perm_b = jax.random.permutation(kb, nb)

    def stack_pad(x, perm, n):
        pad = ((0, npad - n), (0, 0))
        return jnp.concatenate([jnp.pad(x, pad), jnp.pad(x[perm], pad)], axis=0)

    xa_all = stack_pad(xa, perm_a, na)                     # [2*Npad, Fa]
    xb_all = stack_pad(xb, perm_b, nb)                     # [2*Npad, Fb]

    def pad_adj(a):
        return jnp.pad(a, ((0, npad - a.shape[0]), (0, npad - a.shape[1])))

    adj_ab = pad_adj(adj[ET_AB])                           # [Npad, Npad]
    adj_ba = pad_adj(adj[ET_BA])

    cab, cba = params["conv"][ET_AB], params["conv"][ET_BA]
    # pack the tiny parameters into two small VMEM tiles
    n_small = -(-(6 + 2 * heads) // 8) * 8
    small = jnp.concatenate(
        [params["lin"]["a"]["b"], params["lin"]["b"]["b"],
         params["prelu"]["a"], params["prelu"]["b"],
         cab["bias"], cba["bias"],
         cab["att_src_blk_t"], cba["att_src_blk_t"],
         jnp.zeros((n_small - 6 - 2 * heads, hidden), jnp.float32)], axis=0)
    fold = jnp.concatenate([cab["w_dst_fold"], cba["w_dst_fold"]], axis=1)

    kern = functools.partial(_fused_kernel, na=na, nb=nb, npad=npad,
                             hidden=hidden, heads=heads)
    # TODO(synk): at larger graphs, tile adj with an online softmax and give
    # the branches a "parallel" grid axis (v7x megacore); unnecessary here.
    out, summ = pl.pallas_call(
        kern,
        out_shape=(jax.ShapeDtypeStruct((npad, 4 * hidden), jnp.float32),
                   jax.ShapeDtypeStruct((1, hidden), jnp.float32)),
        in_specs=[_VMEM] * 10,
        out_specs=(_VMEM, _VMEM),
    )(xa_all, xb_all, adj_ab, adj_ba,
      params["lin"]["a"]["w"], params["lin"]["b"]["w"],
      cab["w_src"], cba["w_src"], fold, small)

    pos_z = {"a": out[:na, 0:hidden], "b": out[:nb, hidden:2 * hidden]}
    neg_z = {"a": out[:na, 2 * hidden:3 * hidden],
             "b": out[:nb, 3 * hidden:4 * hidden]}
    return pos_z, neg_z, summ[0]


if __name__ == "__main__":
    key = jax.random.PRNGKey(0)
    hidden_channels = 32
    n_nodes = {"a": 16, "b": 24}
    feat_dims = {"a": 8, "b": 16}

    key, kx_a, kx_b, ka1, ka2, kperm, kparam = jax.random.split(key, 7)
    x_raw = {
        "a": jax.random.normal(kx_a, (n_nodes["a"], feat_dims["a"]),
                               jnp.float32),
        "b": jax.random.normal(kx_b, (n_nodes["b"], feat_dims["b"]),
                               jnp.float32),
    }

    def rand_adj(k, nd, ns):
        a = (jax.random.uniform(k, (nd, ns)) < 0.35).astype(jnp.float32)
        return a.at[:, 0].set(1.0)   # guarantee every dst node has an in-edge

    adj = {
        ET_AB: rand_adj(ka1, n_nodes["b"], n_nodes["a"]),   # a -> b
        ET_BA: rand_adj(ka2, n_nodes["a"], n_nodes["b"]),   # b -> a
    }

    params = init_params(kparam, hidden_channels, feat_dims)

    pos_z, neg_z, summ = lant_model_forward(params, x_raw, adj, kperm)
    jax.block_until_ready((pos_z, neg_z, summ))

    assert pos_z["a"].shape == (n_nodes["a"], hidden_channels)
    assert pos_z["b"].shape == (n_nodes["b"], hidden_channels)
    assert neg_z["a"].shape == (n_nodes["a"], hidden_channels)
    assert neg_z["b"].shape == (n_nodes["b"], hidden_channels)
    assert summ.shape == (hidden_channels,)
    assert bool(jnp.all(jnp.isfinite(pos_z["a"])))
    assert bool(jnp.all(jnp.isfinite(pos_z["b"])))
    assert bool(jnp.all(jnp.isfinite(neg_z["a"])))
    assert bool(jnp.all(jnp.isfinite(neg_z["b"])))
    assert bool(jnp.all(jnp.isfinite(summ)))

    print("KERNEL_OK")
</pallas_src>

<mosaic_0001>
module attributes {stable_mosaic.version = 11 : i64} {
  func.func @_fused_kernel(%arg0: memref<48x8xf32, #tpu.memory_space<vmem>>, %arg1: memref<48x16xf32, #tpu.memory_space<vmem>>, %arg2: memref<24x24xf32, #tpu.memory_space<vmem>>, %arg3: memref<24x24xf32, #tpu.memory_space<vmem>>, %arg4: memref<8x32xf32, #tpu.memory_space<vmem>>, %arg5: memref<16x32xf32, #tpu.memory_space<vmem>>, %arg6: memref<32x32xf32, #tpu.memory_space<vmem>>, %arg7: memref<32x32xf32, #tpu.memory_space<vmem>>, %arg8: memref<32x4xf32, #tpu.memory_space<vmem>>, %arg9: memref<16x32xf32, #tpu.memory_space<vmem>>, %arg10: memref<24x128xf32, #tpu.memory_space<vmem>>, %arg11: memref<1x32xf32, #tpu.memory_space<vmem>>) attributes {dimension_semantics = [], scalar_prefetch = 0 : i64, scratch_operands = 0 : i64, tpu.core_type = #tpu.core_type<tc>} {
    %c0 = arith.constant 0 : index
    %c0_0 = arith.constant 0 : index
    %0 = vector.load %arg9[%c0, %c0_0] : memref<16x32xf32, #tpu.memory_space<vmem>>, vector<1x32xf32>
    %c1 = arith.constant 1 : index
    %c0_1 = arith.constant 0 : index
    %1 = vector.load %arg9[%c1, %c0_1] : memref<16x32xf32, #tpu.memory_space<vmem>>, vector<1x32xf32>
    %c2 = arith.constant 2 : index
    %c0_2 = arith.constant 0 : index
    %2 = vector.load %arg9[%c2, %c0_2] : memref<16x32xf32, #tpu.memory_space<vmem>>, vector<1x32xf32>
    %c3 = arith.constant 3 : index
    %c0_3 = arith.constant 0 : index
    %3 = vector.load %arg9[%c3, %c0_3] : memref<16x32xf32, #tpu.memory_space<vmem>>, vector<1x32xf32>
    %c4 = arith.constant 4 : index
    %c0_4 = arith.constant 0 : index
    %4 = vector.load %arg9[%c4, %c0_4] : memref<16x32xf32, #tpu.memory_space<vmem>>, vector<1x32xf32>
    %c5 = arith.constant 5 : index
    %c0_5 = arith.constant 0 : index
    %5 = vector.load %arg9[%c5, %c0_5] : memref<16x32xf32, #tpu.memory_space<vmem>>, vector<1x32xf32>
    %c6 = arith.constant 6 : index
    %c0_6 = arith.constant 0 : index
    %6 = vector.load %arg9[%c6, %c0_6] : memref<16x32xf32, #tpu.memory_space<vmem>>, vector<2x32xf32>
    %c8 = arith.constant 8 : index
    %c0_7 = arith.constant 0 : index
    %7 = vector.load %arg9[%c8, %c0_7] : memref<16x32xf32, #tpu.memory_space<vmem>>, vector<2x32xf32>
    %c0_8 = arith.constant 0 : index
    %c0_9 = arith.constant 0 : index
    %8 = vector.load %arg8[%c0_8, %c0_9] : memref<32x4xf32, #tpu.memory_space<vmem>>, vector<32x2xf32>
    %c0_10 = arith.constant 0 : index
    %c2_11 = arith.constant 2 : index
    %9 = vector.load %arg8[%c0_10, %c2_11] : memref<32x4xf32, #tpu.memory_space<vmem>>, vector<32x2xf32>
    %c0_12 = arith.constant 0 : index
    %c0_13 = arith.constant 0 : index
    %10 = vector.load %arg0[%c0_12, %c0_13] : memref<48x8xf32, #tpu.memory_space<vmem>>, vector<48x8xf32>
    %c0_14 = arith.constant 0 : index
    %c0_15 = arith.constant 0 : index
    %11 = vector.load %arg4[%c0_14, %c0_15] : memref<8x32xf32, #tpu.memory_space<vmem>>, vector<8x32xf32>
    %12 = arith.truncf %10 : vector<48x8xf32> to vector<48x8xbf16>
    %13 = arith.truncf %11 : vector<8x32xf32> to vector<8x32xbf16>
    %cst = arith.constant dense<0.000000e+00> : vector<48x32xf32>
    %14 = tpu.matmul %12, %13, %cst {dimension_numbers = #tpu.dot_dimension_numbers<[1], [0], [0], [1], [0, 0, 1, 1], [], []>} : vector<48x8xbf16>, vector<8x32xbf16>, vector<48x32xf32> -> vector<48x32xf32>
    %15 = vector.broadcast %0 : vector<1x32xf32> to vector<48x32xf32>
    %16 = arith.addf %14, %15 : vector<48x32xf32>
    %c0_16 = arith.constant 0 : index
    %c0_17 = arith.constant 0 : index
    %17 = vector.load %arg1[%c0_16, %c0_17] : memref<48x16xf32, #tpu.memory_space<vmem>>, vector<48x16xf32>
    %c0_18 = arith.constant 0 : index
    %c0_19 = arith.constant 0 : index
    %18 = vector.load %arg5[%c0_18, %c0_19] : memref<16x32xf32, #tpu.memory_space<vmem>>, vector<16x32xf32>
    %19 = arith.truncf %17 : vector<48x16xf32> to vector<48x16xbf16>
    %20 = arith.truncf %18 : vector<16x32xf32> to vector<16x32xbf16>
    %cst_20 = arith.constant dense<0.000000e+00> : vector<48x32xf32>
    %21 = tpu.matmul %19, %20, %cst_20 {dimension_numbers = #tpu.dot_dimension_numbers<[1], [0], [0], [1], [0, 0, 1, 1], [], []>} : vector<48x16xbf16>, vector<16x32xbf16>, vector<48x32xf32> -> vector<48x32xf32>
    %22 = vector.broadcast %1 : vector<1x32xf32> to vector<48x32xf32>
    %23 = arith.addf %21, %22 : vector<48x32xf32>
    %c0_21 = arith.constant 0 : index
    %c0_22 = arith.constant 0 : index
    %24 = vector.load %arg6[%c0_21, %c0_22] : memref<32x32xf32, #tpu.memory_space<vmem>>, vector<32x32xf32>
    %25 = arith.truncf %16 : vector<48x32xf32> to vector<48x32xbf16>
    %26 = arith.truncf %24 : vector<32x32xf32> to vector<32x32xbf16>
    %cst_23 = arith.constant dense<0.000000e+00> : vector<48x32xf32>
    %27 = tpu.matmul %25, %26, %cst_23 {dimension_numbers = #tpu.dot_dimension_numbers<[1], [0], [0], [1], [0, 0, 1, 1], [], []>} : vector<48x32xbf16>, vector<32x32xbf16>, vector<48x32xf32> -> vector<48x32xf32>
    %c0_24 = arith.constant 0 : index
    %c0_25 = arith.constant 0 : index
    %28 = vector.load %arg7[%c0_24, %c0_25] : memref<32x32xf32, #tpu.memory_space<vmem>>, vector<32x32xf32>
    %29 = arith.truncf %23 : vector<48x32xf32> to vector<48x32xbf16>
    %30 = arith.truncf %28 : vector<32x32xf32> to vector<32x32xbf16>
    %cst_26 = arith.constant dense<0.000000e+00> : vector<48x32xf32>
    %31 = tpu.matmul %29, %30, %cst_26 {dimension_numbers = #tpu.dot_dimension_numbers<[1], [0], [0], [1], [0, 0, 1, 1], [], []>} : vector<48x32xbf16>, vector<32x32xbf16>, vector<48x32xf32> -> vector<48x32xf32>
    %32 = arith.truncf %23 : vector<48x32xf32> to vector<48x32xbf16>
    %33 = arith.truncf %8 : vector<32x2xf32> to vector<32x2xbf16>
    %cst_27 = arith.constant dense<0.000000e+00> : vector<48x2xf32>
    %34 = tpu.matmul %32, %33, %cst_27 {dimension_numbers = #tpu.dot_dimension_numbers<[1], [0], [0], [1], [0, 0, 1, 1], [], []>} : vector<48x32xbf16>, vector<32x2xbf16>, vector<48x2xf32> -> vector<48x2xf32>
    %35 = arith.truncf %16 : vector<48x32xf32> to vector<48x32xbf16>
    %36 = arith.truncf %9 : vector<32x2xf32> to vector<32x2xbf16>
    %cst_28 = arith.constant dense<0.000000e+00> : vector<48x2xf32>
    %37 = tpu.matmul %35, %36, %cst_28 {dimension_numbers = #tpu.dot_dimension_numbers<[1], [0], [0], [1], [0, 0, 1, 1], [], []>} : vector<48x32xbf16>, vector<32x2xbf16>, vector<48x2xf32> -> vector<48x2xf32>
    %38 = tpu.iota {dimensions = array<i32: 1>} : vector<1x32xi32>
    %c0_29 = arith.constant 0 : index
    %c0_30 = arith.constant 0 : index
    %39 = vector.load %arg2[%c0_29, %c0_30] : memref<24x24xf32, #tpu.memory_space<vmem>>, vector<24x24xf32>
    %c0_31 = arith.constant 0 : index
    %c0_32 = arith.constant 0 : index
    %40 = vector.load %arg3[%c0_31, %c0_32] : memref<24x24xf32, #tpu.memory_space<vmem>>, vector<24x24xf32>
    %41 = vector.extract_strided_slice %27 {offsets = [0, 0], sizes = [24, 32], strides = [1, 1]} : vector<48x32xf32> to vector<24x32xf32>
    %42 = vector.extract_strided_slice %34 {offsets = [0, 0], sizes = [24, 2], strides = [1, 1]} : vector<48x2xf32> to vector<24x2xf32>
    %43 = arith.truncf %6 : vector<2x32xf32> to vector<2x32xbf16>
    %44 = arith.truncf %41 : vector<24x32xf32> to vector<24x32xbf16>
    %cst_33 = arith.constant dense<0.000000e+00> : vector<2x24xf32>
    %45 = tpu.matmul %43, %44, %cst_33 {dimension_numbers = #tpu.dot_dimension_numbers<[1], [1], [0], [0], [0, 0, 1, 0], [], []>} : vector<2x32xbf16>, vector<24x32xbf16>, vector<2x24xf32> -> vector<2x24xf32>
    %cst_34 = arith.constant 0.000000e+00 : f32
    %46 = vector.broadcast %cst_34 : f32 to vector<24x32xf32>
    %47 = vector.extract_strided_slice %42 {offsets = [0, 0], sizes = [24, 1], strides = [1, 1]} : vector<24x2xf32> to vector<24x1xf32>
    %48 = vector.extract_strided_slice %45 {offsets = [0, 0], sizes = [1, 24], strides = [1, 1]} : vector<2x24xf32> to vector<1x24xf32>
    %49 = vector.broadcast %47 : vector<24x1xf32> to vector<24x24xf32>
    %50 = vector.broadcast %48 : vector<1x24xf32> to vector<24x24xf32>
    %51 = arith.addf %49, %50 : vector<24x24xf32>
    %cst_35 = arith.constant 0.000000e+00 : f32
    %52 = vector.broadcast %cst_35 : f32 to vector<24x24xf32>
    %53 = arith.cmpf ogt, %51, %52 : vector<24x24xf32>
    %cst_36 = arith.constant 2.000000e-01 : f32
    %54 = vector.broadcast %cst_36 : f32 to vector<24x24xf32>
    %55 = arith.mulf %54, %51 : vector<24x24xf32>
    %56 = arith.select %53, %51, %55 : vector<24x24xi1>, vector<24x24xf32>
    %cst_37 = arith.constant 0.000000e+00 : f32
    %57 = vector.broadcast %cst_37 : f32 to vector<24x24xf32>
    %58 = arith.cmpf ogt, %39, %57 : vector<24x24xf32>
    %cst_38 = arith.constant -1.000000e+30 : f32
    %59 = vector.broadcast %cst_38 : f32 to vector<24x24xf32>
    %60 = arith.select %58, %56, %59 : vector<24x24xi1>, vector<24x24xf32>
    %cst_39 = arith.constant dense<0xFF800000> : vector<24xf32>
    %61 = vector.multi_reduction <maximumf>, %60, %cst_39 [1] : vector<24x24xf32> to vector<24xf32>
    %62 = vector.shape_cast %61 : vector<24xf32> to vector<24x1xf32>
    %cst_40 = arith.constant 0.000000e+00 : f32
    %63 = vector.broadcast %cst_40 : f32 to vector<24x24xf32>
    %64 = arith.cmpf ogt, %39, %63 : vector<24x24xf32>
    %65 = vector.broadcast %62 : vector<24x1xf32> to vector<24x24xf32>
    %66 = arith.subf %60, %65 : vector<24x24xf32>
    %67 = math.exp %66 : vector<24x24xf32>
    %cst_41 = arith.constant 0.000000e+00 : f32
    %68 = vector.broadcast %cst_41 : f32 to vector<24x24xf32>
    %69 = arith.select %64, %67, %68 : vector<24x24xi1>, vector<24x24xf32>
    %cst_42 = arith.constant dense<0.000000e+00> : vector<24xf32>
    %70 = vector.multi_reduction <add>, %69, %cst_42 [1] : vector<24x24xf32> to vector<24xf32>
    %71 = vector.shape_cast %70 : vector<24xf32> to vector<24x1xf32>
    %cst_43 = arith.constant 1.000000e-16 : f32
    %72 = vector.broadcast %cst_43 : f32 to vector<24x1xf32>
    %73 = arith.maximumf %71, %72 : vector<24x1xf32>
    %74 = tpu.reciprocal %73 {approx = true} : vector<24x1xf32> -> vector<24x1xf32>
    %75 = vector.broadcast %74 : vector<24x1xf32> to vector<24x24xf32>
    %76 = arith.mulf %69, %75 : vector<24x24xf32>
    %77 = arith.truncf %76 : vector<24x24xf32> to vector<24x24xbf16>
    %78 = arith.truncf %41 : vector<24x32xf32> to vector<24x32xbf16>
    %cst_44 = arith.constant dense<0.000000e+00> : vector<24x32xf32>
    %79 = tpu.matmul %77, %78, %cst_44 {dimension_numbers = #tpu.dot_dimension_numbers<[1], [0], [0], [1], [0, 0, 1, 1], [], []>} : vector<24x24xbf16>, vector<24x32xbf16>, vector<24x32xf32> -> vector<24x32xf32>
    %c0_i32 = arith.constant 0 : i32
    %80 = vector.broadcast %c0_i32 : i32 to vector<1x32xi32>
    %81 = arith.cmpi sge, %38, %80 : vector<1x32xi32>
    %c16_i32 = arith.constant 16 : i32
    %82 = vector.broadcast %c16_i32 : i32 to vector<1x32xi32>
    %83 = arith.cmpi slt, %38, %82 : vector<1x32xi32>
    %84 = arith.andi %81, %83 : vector<1x32xi1>
    %85 = vector.shape_cast %84 : vector<1x32xi1> to vector<1x32xi1>
    %86 = vector.broadcast %85 : vector<1x32xi1> to vector<24x32xi1>
    %87 = arith.select %86, %79, %46 : vector<24x32xi1>, vector<24x32xf32>
    %88 = vector.extract_strided_slice %42 {offsets = [0, 1], sizes = [24, 1], strides = [1, 1]} : vector<24x2xf32> to vector<24x1xf32>
    %89 = vector.extract_strided_slice %45 {offsets = [1, 0], sizes = [1, 24], strides = [1, 1]} : vector<2x24xf32> to vector<1x24xf32>
    %90 = vector.broadcast %88 : vector<24x1xf32> to vector<24x24xf32>
    %91 = vector.broadcast %89 : vector<1x24xf32> to vector<24x24xf32>
    %92 = arith.addf %90, %91 : vector<24x24xf32>
    %cst_45 = arith.constant 0.000000e+00 : f32
    %93 = vector.broadcast %cst_45 : f32 to vector<24x24xf32>
    %94 = arith.cmpf ogt, %92, %93 : vector<24x24xf32>
    %cst_46 = arith.constant 2.000000e-01 : f32
    %95 = vector.broadcast %cst_46 : f32 to vector<24x24xf32>
    %96 = arith.mulf %95, %92 : vector<24x24xf32>
    %97 = arith.select %94, %92, %96 : vector<24x24xi1>, vector<24x24xf32>
    %cst_47 = arith.constant 0.000000e+00 : f32
    %98 = vector.broadcast %cst_47 : f32 to vector<24x24xf32>
    %99 = arith.cmpf ogt, %39, %98 : vector<24x24xf32>
    %cst_48 = arith.constant -1.000000e+30 : f32
    %100 = vector.broadcast %cst_48 : f32 to vector<24x24xf32>
    %101 = arith.select %99, %97, %100 : vector<24x24xi1>, vector<24x24xf32>
    %cst_49 = arith.constant dense<0xFF800000> : vector<24xf32>
    %102 = vector.multi_reduction <maximumf>, %101, %cst_49 [1] : vector<24x24xf32> to vector<24xf32>
    %103 = vector.shape_cast %102 : vector<24xf32> to vector<24x1xf32>
    %cst_50 = arith.constant 0.000000e+00 : f32
    %104 = vector.broadcast %cst_50 : f32 to vector<24x24xf32>
    %105 = arith.cmpf ogt, %39, %104 : vector<24x24xf32>
    %106 = vector.broadcast %103 : vector<24x1xf32> to vector<24x24xf32>
    %107 = arith.subf %101, %106 : vector<24x24xf32>
    %108 = math.exp %107 : vector<24x24xf32>
    %cst_51 = arith.constant 0.000000e+00 : f32
    %109 = vector.broadcast %cst_51 : f32 to vector<24x24xf32>
    %110 = arith.select %105, %108, %109 : vector<24x24xi1>, vector<24x24xf32>
    %cst_52 = arith.constant dense<0.000000e+00> : vector<24xf32>
    %111 = vector.multi_reduction <add>, %110, %cst_52 [1] : vector<24x24xf32> to vector<24xf32>
    %112 = vector.shape_cast %111 : vector<24xf32> to vector<24x1xf32>
    %cst_53 = arith.constant 1.000000e-16 : f32
    %113 = vector.broadcast %cst_53 : f32 to vector<24x1xf32>
    %114 = arith.maximumf %112, %113 : vector<24x1xf32>
    %115 = tpu.reciprocal %114 {approx = true} : vector<24x1xf32> -> vector<24x1xf32>
    %116 = vector.broadcast %115 : vector<24x1xf32> to vector<24x24xf32>
    %117 = arith.mulf %110, %116 : vector<24x24xf32>
    %118 = arith.truncf %117 : vector<24x24xf32> to vector<24x24xbf16>
    %119 = arith.truncf %41 : vector<24x32xf32> to vector<24x32xbf16>
    %cst_54 = arith.constant dense<0.000000e+00> : vector<24x32xf32>
    %120 = tpu.matmul %118, %119, %cst_54 {dimension_numbers = #tpu.dot_dimension_numbers<[1], [0], [0], [1], [0, 0, 1, 1], [], []>} : vector<24x24xbf16>, vector<24x32xbf16>, vector<24x32xf32> -> vector<24x32xf32>
    %c16_i32_55 = arith.constant 16 : i32
    %121 = vector.broadcast %c16_i32_55 : i32 to vector<1x32xi32>
    %122 = arith.cmpi sge, %38, %121 : vector<1x32xi32>
    %c32_i32 = arith.constant 32 : i32
    %123 = vector.broadcast %c32_i32 : i32 to vector<1x32xi32>
    %124 = arith.cmpi slt, %38, %123 : vector<1x32xi32>
    %125 = arith.andi %122, %124 : vector<1x32xi1>
    %126 = vector.shape_cast %125 : vector<1x32xi1> to vector<1x32xi1>
    %127 = vector.broadcast %126 : vector<1x32xi1> to vector<24x32xi1>
    %128 = arith.select %127, %120, %87 : vector<24x32xi1>, vector<24x32xf32>
    %129 = vector.broadcast %4 : vector<1x32xf32> to vector<24x32xf32>
    %130 = arith.addf %128, %129 : vector<24x32xf32>
    %cst_56 = arith.constant 0.000000e+00 : f32
    %131 = vector.broadcast %cst_56 : f32 to vector<24x32xf32>
    %132 = arith.cmpf oge, %130, %131 : vector<24x32xf32>
    %133 = vector.broadcast %3 : vector<1x32xf32> to vector<24x32xf32>
    %134 = arith.mulf %133, %130 : vector<24x32xf32>
    %135 = arith.select %132, %130, %134 : vector<24x32xi1>, vector<24x32xf32>
    %136 = vector.extract_strided_slice %27 {offsets = [24, 0], sizes = [24, 32], strides = [1, 1]} : vector<48x32xf32> to vector<24x32xf32>
    %137 = vector.extract_strided_slice %34 {offsets = [24, 0], sizes = [24, 2], strides = [1, 1]} : vector<48x2xf32> to vector<24x2xf32>
    %138 = arith.truncf %6 : vector<2x32xf32> to vector<2x32xbf16>
    %139 = arith.truncf %136 : vector<24x32xf32> to vector<24x32xbf16>
    %cst_57 = arith.constant dense<0.000000e+00> : vector<2x24xf32>
    %140 = tpu.matmul %138, %139, %cst_57 {dimension_numbers = #tpu.dot_dimension_numbers<[1], [1], [0], [0], [0, 0, 1, 0], [], []>} : vector<2x32xbf16>, vector<24x32xbf16>, vector<2x24xf32> -> vector<2x24xf32>
    %cst_58 = arith.constant 0.000000e+00 : f32
    %141 = vector.broadcast %cst_58 : f32 to vector<24x32xf32>
    %142 = vector.extract_strided_slice %137 {offsets = [0, 0], sizes = [24, 1], strides = [1, 1]} : vector<24x2xf32> to vector<24x1xf32>
    %143 = vector.extract_strided_slice %140 {offsets = [0, 0], sizes = [1, 24], strides = [1, 1]} : vector<2x24xf32> to vector<1x24xf32>
    %144 = vector.broadcast %142 : vector<24x1xf32> to vector<24x24xf32>
    %145 = vector.broadcast %143 : vector<1x24xf32> to vector<24x24xf32>
    %146 = arith.addf %144, %145 : vector<24x24xf32>
    %cst_59 = arith.constant 0.000000e+00 : f32
    %147 = vector.broadcast %cst_59 : f32 to vector<24x24xf32>
    %148 = arith.cmpf ogt, %146, %147 : vector<24x24xf32>
    %cst_60 = arith.constant 2.000000e-01 : f32
    %149 = vector.broadcast %cst_60 : f32 to vector<24x24xf32>
    %150 = arith.mulf %149, %146 : vector<24x24xf32>
    %151 = arith.select %148, %146, %150 : vector<24x24xi1>, vector<24x24xf32>
    %cst_61 = arith.constant 0.000000e+00 : f32
    %152 = vector.broadcast %cst_61 : f32 to vector<24x24xf32>
    %153 = arith.cmpf ogt, %39, %152 : vector<24x24xf32>
    %cst_62 = arith.constant -1.000000e+30 : f32
    %154 = vector.broadcast %cst_62 : f32 to vector<24x24xf32>
    %155 = arith.select %153, %151, %154 : vector<24x24xi1>, vector<24x24xf32>
    %cst_63 = arith.constant dense<0xFF800000> : vector<24xf32>
    %156 = vector.multi_reduction <maximumf>, %155, %cst_63 [1] : vector<24x24xf32> to vector<24xf32>
    %157 = vector.shape_cast %156 : vector<24xf32> to vector<24x1xf32>
    %cst_64 = arith.constant 0.000000e+00 : f32
    %158 = vector.broadcast %cst_64 : f32 to vector<24x24xf32>
    %159 = arith.cmpf ogt, %39, %158 : vector<24x24xf32>
    %160 = vector.broadcast %157 : vector<24x1xf32> to vector<24x24xf32>
    %161 = arith.subf %155, %160 : vector<24x24xf32>
    %162 = math.exp %161 : vector<24x24xf32>
    %cst_65 = arith.constant 0.000000e+00 : f32
    %163 = vector.broadcast %cst_65 : f32 to vector<24x24xf32>
    %164 = arith.select %159, %162, %163 : vector<24x24xi1>, vector<24x24xf32>
    %cst_66 = arith.constant dense<0.000000e+00> : vector<24xf32>
    %165 = vector.multi_reduction <add>, %164, %cst_66 [1] : vector<24x24xf32> to vector<24xf32>
    %166 = vector.shape_cast %165 : vector<24xf32> to vector<24x1xf32>
    %cst_67 = arith.constant 1.000000e-16 : f32
    %167 = vector.broadcast %cst_67 : f32 to vector<24x1xf32>
    %168 = arith.maximumf %166, %167 : vector<24x1xf32>
    %169 = tpu.reciprocal %168 {approx = true} : vector<24x1xf32> -> vector<24x1xf32>
    %170 = vector.broadcast %169 : vector<24x1xf32> to vector<24x24xf32>
    %171 = arith.mulf %164, %170 : vector<24x24xf32>
    %172 = arith.truncf %171 : vector<24x24xf32> to vector<24x24xbf16>
    %173 = arith.truncf %136 : vector<24x32xf32> to vector<24x32xbf16>
    %cst_68 = arith.constant dense<0.000000e+00> : vector<24x32xf32>
    %174 = tpu.matmul %172, %173, %cst_68 {dimension_numbers = #tpu.dot_dimension_numbers<[1], [0], [0], [1], [0, 0, 1, 1], [], []>} : vector<24x24xbf16>, vector<24x32xbf16>, vector<24x32xf32> -> vector<24x32xf32>
    %c0_i32_69 = arith.constant 0 : i32
    %175 = vector.broadcast %c0_i32_69 : i32 to vector<1x32xi32>
    %176 = arith.cmpi sge, %38, %175 : vector<1x32xi32>
    %c16_i32_70 = arith.constant 16 : i32
    %177 = vector.broadcast %c16_i32_70 : i32 to vector<1x32xi32>
    %178 = arith.cmpi slt, %38, %177 : vector<1x32xi32>
    %179 = arith.andi %176, %178 : vector<1x32xi1>
    %180 = vector.shape_cast %179 : vector<1x32xi1> to vector<1x32xi1>
    %181 = vector.broadcast %180 : vector<1x32xi1> to vector<24x32xi1>
    %182 = arith.select %181, %174, %141 : vector<24x32xi1>, vector<24x32xf32>
    %183 = vector.extract_strided_slice %137 {offsets = [0, 1], sizes = [24, 1], strides = [1, 1]} : vector<24x2xf32> to vector<24x1xf32>
    %184 = vector.extract_strided_slice %140 {offsets = [1, 0], sizes = [1, 24], strides = [1, 1]} : vector<2x24xf32> to vector<1x24xf32>
    %185 = vector.broadcast %183 : vector<24x1xf32> to vector<24x24xf32>
    %186 = vector.broadcast %184 : vector<1x24xf32> to vector<24x24xf32>
    %187 = arith.addf %185, %186 : vector<24x24xf32>
    %cst_71 = arith.constant 0.000000e+00 : f32
    %188 = vector.broadcast %cst_71 : f32 to vector<24x24xf32>
    %189 = arith.cmpf ogt, %187, %188 : vector<24x24xf32>
    %cst_72 = arith.constant 2.000000e-01 : f32
    %190 = vector.broadcast %cst_72 : f32 to vector<24x24xf32>
    %191 = arith.mulf %190, %187 : vector<24x24xf32>
    %192 = arith.select %189, %187, %191 : vector<24x24xi1>, vector<24x24xf32>
    %cst_73 = arith.constant 0.000000e+00 : f32
    %193 = vector.broadcast %cst_73 : f32 to vector<24x24xf32>
    %194 = arith.cmpf ogt, %39, %193 : vector<24x24xf32>
    %cst_74 = arith.constant -1.000000e+30 : f32
    %195 = vector.broadcast %cst_74 : f32 to vector<24x24xf32>
    %196 = arith.select %194, %192, %195 : vector<24x24xi1>, vector<24x24xf32>
    %cst_75 = arith.constant dense<0xFF800000> : vector<24xf32>
    %197 = vector.multi_reduction <maximumf>, %196, %cst_75 [1] : vector<24x24xf32> to vector<24xf32>
    %198 = vector.shape_cast %197 : vector<24xf32> to vector<24x1xf32>
    %cst_76 = arith.constant 0.000000e+00 : f32
    %199 = vector.broadcast %cst_76 : f32 to vector<24x24xf32>
    %200 = arith.cmpf ogt, %39, %199 : vector<24x24xf32>
    %201 = vector.broadcast %198 : vector<24x1xf32> to vector<24x24xf32>
    %202 = arith.subf %196, %201 : vector<24x24xf32>
    %203 = math.exp %202 : vector<24x24xf32>
    %cst_77 = arith.constant 0.000000e+00 : f32
    %204 = vector.broadcast %cst_77 : f32 to vector<24x24xf32>
    %205 = arith.select %200, %203, %204 : vector<24x24xi1>, vector<24x24xf32>
    %cst_78 = arith.constant dense<0.000000e+00> : vector<24xf32>
    %206 = vector.multi_reduction <add>, %205, %cst_78 [1] : vector<24x24xf32> to vector<24xf32>
    %207 = vector.shape_cast %206 : vector<24xf32> to vector<24x1xf32>
    %cst_79 = arith.constant 1.000000e-16 : f32
    %208 = vector.broadcast %cst_79 : f32 to vector<24x1xf32>
    %209 = arith.maximumf %207, %208 : vector<24x1xf32>
    %210 = tpu.reciprocal %209 {approx = true} : vector<24x1xf32> -> vector<24x1xf32>
    %211 = vector.broadcast %210 : vector<24x1xf32> to vector<24x24xf32>
    %212 = arith.mulf %205, %211 : vector<24x24xf32>
    %213 = arith.truncf %212 : vector<24x24xf32> to vector<24x24xbf16>
    %214 = arith.truncf %136 : vector<24x32xf32> to vector<24x32xbf16>
    %cst_80 = arith.constant dense<0.000000e+00> : vector<24x32xf32>
    %215 = tpu.matmul %213, %214, %cst_80 {dimension_numbers = #tpu.dot_dimension_numbers<[1], [0], [0], [1], [0, 0, 1, 1], [], []>} : vector<24x24xbf16>, vector<24x32xbf16>, vector<24x32xf32> -> vector<24x32xf32>
    %c16_i32_81 = arith.constant 16 : i32
    %216 = vector.broadcast %c16_i32_81 : i32 to vector<1x32xi32>
    %217 = arith.cmpi sge, %38, %216 : vector<1x32xi32>
    %c32_i32_82 = arith.constant 32 : i32
    %218 = vector.broadcast %c32_i32_82 : i32 to vector<1x32xi32>
    %219 = arith.cmpi slt, %38, %218 : vector<1x32xi32>
    %220 = arith.andi %217, %219 : vector<1x32xi1>
    %221 = vector.shape_cast %220 : vector<1x32xi1> to vector<1x32xi1>
    %222 = vector.broadcast %221 : vector<1x32xi1> to vector<24x32xi1>
    %223 = arith.select %222, %215, %182 : vector<24x32xi1>, vector<24x32xf32>
    %224 = vector.broadcast %4 : vector<1x32xf32> to vector<24x32xf32>
    %225 = arith.addf %223, %224 : vector<24x32xf32>
    %cst_83 = arith.constant 0.000000e+00 : f32
    %226 = vector.broadcast %cst_83 : f32 to vector<24x32xf32>
    %227 = arith.cmpf oge, %225, %226 : vector<24x32xf32>
    %228 = vector.broadcast %3 : vector<1x32xf32> to vector<24x32xf32>
    %229 = arith.mulf %228, %225 : vector<24x32xf32>
    %230 = arith.select %227, %225, %229 : vector<24x32xi1>, vector<24x32xf32>
    %231 = vector.extract_strided_slice %31 {offsets = [0, 0], sizes = [24, 32], strides = [1, 1]} : vector<48x32xf32> to vector<24x32xf32>
    %232 = vector.extract_strided_slice %37 {offsets = [0, 0], sizes = [24, 2], strides = [1, 1]} : vector<48x2xf32> to vector<24x2xf32>
    %233 = arith.truncf %7 : vector<2x32xf32> to vector<2x32xbf16>
    %234 = arith.truncf %231 : vector<24x32xf32> to vector<24x32xbf16>
    %cst_84 = arith.constant dense<0.000000e+00> : vector<2x24xf32>
    %235 = tpu.matmul %233, %234, %cst_84 {dimension_numbers = #tpu.dot_dimension_numbers<[1], [1], [0], [0], [0, 0, 1, 0], [], []>} : vector<2x32xbf16>, vector<24x32xbf16>, vector<2x24xf32> -> vector<2x24xf32>
    %cst_85 = arith.constant 0.000000e+00 : f32
    %236 = vector.broadcast %cst_85 : f32 to vector<24x32xf32>
    %237 = vector.extract_strided_slice %232 {offsets = [0, 0], sizes = [24, 1], strides = [1, 1]} : vector<24x2xf32> to vector<24x1xf32>
    %238 = vector.extract_strided_slice %235 {offsets = [0, 0], sizes = [1, 24], strides = [1, 1]} : vector<2x24xf32> to vector<1x24xf32>
    %239 = vector.broadcast %237 : vector<24x1xf32> to vector<24x24xf32>
    %240 = vector.broadcast %238 : vector<1x24xf32> to vector<24x24xf32>
    %241 = arith.addf %239, %240 : vector<24x24xf32>
    %cst_86 = arith.constant 0.000000e+00 : f32
    %242 = vector.broadcast %cst_86 : f32 to vector<24x24xf32>
    %243 = arith.cmpf ogt, %241, %242 : vector<24x24xf32>
    %cst_87 = arith.constant 2.000000e-01 : f32
    %244 = vector.broadcast %cst_87 : f32 to vector<24x24xf32>
    %245 = arith.mulf %244, %241 : vector<24x24xf32>
    %246 = arith.select %243, %241, %245 : vector<24x24xi1>, vector<24x24xf32>
    %cst_88 = arith.constant 0.000000e+00 : f32
    %247 = vector.broadcast %cst_88 : f32 to vector<24x24xf32>
    %248 = arith.cmpf ogt, %40, %247 : vector<24x24xf32>
    %cst_89 = arith.constant -1.000000e+30 : f32
    %249 = vector.broadcast %cst_89 : f32 to vector<24x24xf32>
    %250 = arith.select %248, %246, %249 : vector<24x24xi1>, vector<24x24xf32>
    %cst_90 = arith.constant dense<0xFF800000> : vector<24xf32>
    %251 = vector.multi_reduction <maximumf>, %250, %cst_90 [1] : vector<24x24xf32> to vector<24xf32>
    %252 = vector.shape_cast %251 : vector<24xf32> to vector<24x1xf32>
    %cst_91 = arith.constant 0.000000e+00 : f32
    %253 = vector.broadcast %cst_91 : f32 to vector<24x24xf32>
    %254 = arith.cmpf ogt, %40, %253 : vector<24x24xf32>
    %255 = vector.broadcast %252 : vector<24x1xf32> to vector<24x24xf32>
    %256 = arith.subf %250, %255 : vector<24x24xf32>
    %257 = math.exp %256 : vector<24x24xf32>
    %cst_92 = arith.constant 0.000000e+00 : f32
    %258 = vector.broadcast %cst_92 : f32 to vector<24x24xf32>
    %259 = arith.select %254, %257, %258 : vector<24x24xi1>, vector<24x24xf32>
    %cst_93 = arith.constant dense<0.000000e+00> : vector<24xf32>
    %260 = vector.multi_reduction <add>, %259, %cst_93 [1] : vector<24x24xf32> to vector<24xf32>
    %261 = vector.shape_cast %260 : vector<24xf32> to vector<24x1xf32>
    %cst_94 = arith.constant 1.000000e-16 : f32
    %262 = vector.broadcast %cst_94 : f32 to vector<24x1xf32>
    %263 = arith.maximumf %261, %262 : vector<24x1xf32>
    %264 = tpu.reciprocal %263 {approx = true} : vector<24x1xf32> -> vector<24x1xf32>
    %265 = vector.broadcast %264 : vector<24x1xf32> to vector<24x24xf32>
    %266 = arith.mulf %259, %265 : vector<24x24xf32>
    %267 = arith.truncf %266 : vector<24x24xf32> to vector<24x24xbf16>
    %268 = arith.truncf %231 : vector<24x32xf32> to vector<24x32xbf16>
    %cst_95 = arith.constant dense<0.000000e+00> : vector<24x32xf32>
    %269 = tpu.matmul %267, %268, %cst_95 {dimension_numbers = #tpu.dot_dimension_numbers<[1], [0], [0], [1], [0, 0, 1, 1], [], []>} : vector<24x24xbf16>, vector<24x32xbf16>, vector<24x32xf32> -> vector<24x32xf32>
    %c0_i32_96 = arith.constant 0 : i32
    %270 = vector.broadcast %c0_i32_96 : i32 to vector<1x32xi32>
    %271 = arith.cmpi sge, %38, %270 : vector<1x32xi32>
    %c16_i32_97 = arith.constant 16 : i32
    %272 = vector.broadcast %c16_i32_97 : i32 to vector<1x32xi32>
    %273 = arith.cmpi slt, %38, %272 : vector<1x32xi32>
    %274 = arith.andi %271, %273 : vector<1x32xi1>
    %275 = vector.shape_cast %274 : vector<1x32xi1> to vector<1x32xi1>
    %276 = vector.broadcast %275 : vector<1x32xi1> to vector<24x32xi1>
    %277 = arith.select %276, %269, %236 : vector<24x32xi1>, vector<24x32xf32>
    %278 = vector.extract_strided_slice %232 {offsets = [0, 1], sizes = [24, 1], strides = [1, 1]} : vector<24x2xf32> to vector<24x1xf32>
    %279 = vector.extract_strided_slice %235 {offsets = [1, 0], sizes = [1, 24], strides = [1, 1]} : vector<2x24xf32> to vector<1x24xf32>
    %280 = vector.broadcast %278 : vector<24x1xf32> to vector<24x24xf32>
    %281 = vector.broadcast %279 : vector<1x24xf32> to vector<24x24xf32>
    %282 = arith.addf %280, %281 : vector<24x24xf32>
    %cst_98 = arith.constant 0.000000e+00 : f32
    %283 = vector.broadcast %cst_98 : f32 to vector<24x24xf32>
    %284 = arith.cmpf ogt, %282, %283 : vector<24x24xf32>
    %cst_99 = arith.constant 2.000000e-01 : f32
    %285 = vector.broadcast %cst_99 : f32 to vector<24x24xf32>
    %286 = arith.mulf %285, %282 : vector<24x24xf32>
    %287 = arith.select %284, %282, %286 : vector<24x24xi1>, vector<24x24xf32>
    %cst_100 = arith.constant 0.000000e+00 : f32
    %288 = vector.broadcast %cst_100 : f32 to vector<24x24xf32>
    %289 = arith.cmpf ogt, %40, %288 : vector<24x24xf32>
    %cst_101 = arith.constant -1.000000e+30 : f32
    %290 = vector.broadcast %cst_101 : f32 to vector<24x24xf32>
    %291 = arith.select %289, %287, %290 : vector<24x24xi1>, vector<24x24xf32>
    %cst_102 = arith.constant dense<0xFF800000> : vector<24xf32>
    %292 = vector.multi_reduction <maximumf>, %291, %cst_102 [1] : vector<24x24xf32> to vector<24xf32>
    %293 = vector.shape_cast %292 : vector<24xf32> to vector<24x1xf32>
    %cst_103 = arith.constant 0.000000e+00 : f32
    %294 = vector.broadcast %cst_103 : f32 to vector<24x24xf32>
    %295 = arith.cmpf ogt, %40, %294 : vector<24x24xf32>
    %296 = vector.broadcast %293 : vector<24x1xf32> to vector<24x24xf32>
    %297 = arith.subf %291, %296 : vector<24x24xf32>
    %298 = math.exp %297 : vector<24x24xf32>
    %cst_104 = arith.constant 0.000000e+00 : f32
    %299 = vector.broadcast %cst_104 : f32 to vector<24x24xf32>
    %300 = arith.select %295, %298, %299 : vector<24x24xi1>, vector<24x24xf32>
    %cst_105 = arith.constant dense<0.000000e+00> : vector<24xf32>
    %301 = vector.multi_reduction <add>, %300, %cst_105 [1] : vector<24x24xf32> to vector<24xf32>
    %302 = vector.shape_cast %301 : vector<24xf32> to vector<24x1xf32>
    %cst_106 = arith.constant 1.000000e-16 : f32
    %303 = vector.broadcast %cst_106 : f32 to vector<24x1xf32>
    %304 = arith.maximumf %302, %303 : vector<24x1xf32>
    %305 = tpu.reciprocal %304 {approx = true} : vector<24x1xf32> -> vector<24x1xf32>
    %306 = vector.broadcast %305 : vector<24x1xf32> to vector<24x24xf32>
    %307 = arith.mulf %300, %306 : vector<24x24xf32>
    %308 = arith.truncf %307 : vector<24x24xf32> to vector<24x24xbf16>
    %309 = arith.truncf %231 : vector<24x32xf32> to vector<24x32xbf16>
    %cst_107 = arith.constant dense<0.000000e+00> : vector<24x32xf32>
    %310 = tpu.matmul %308, %309, %cst_107 {dimension_numbers = #tpu.dot_dimension_numbers<[1], [0], [0], [1], [0, 0, 1, 1], [], []>} : vector<24x24xbf16>, vector<24x32xbf16>, vector<24x32xf32> -> vector<24x32xf32>
    %c16_i32_108 = arith.constant 16 : i32
    %311 = vector.broadcast %c16_i32_108 : i32 to vector<1x32xi32>
    %312 = arith.cmpi sge, %38, %311 : vector<1x32xi32>
    %c32_i32_109 = arith.constant 32 : i32
    %313 = vector.broadcast %c32_i32_109 : i32 to vector<1x32xi32>
    %314 = arith.cmpi slt, %38, %313 : vector<1x32xi32>
    %315 = arith.andi %312, %314 : vector<1x32xi1>
    %316 = vector.shape_cast %315 : vector<1x32xi1> to vector<1x32xi1>
    %317 = vector.broadcast %316 : vector<1x32xi1> to vector<24x32xi1>
    %318 = arith.select %317, %310, %277 : vector<24x32xi1>, vector<24x32xf32>
    %319 = vector.broadcast %5 : vector<1x32xf32> to vector<24x32xf32>
    %320 = arith.addf %318, %319 : vector<24x32xf32>
    %cst_110 = arith.constant 0.000000e+00 : f32
    %321 = vector.broadcast %cst_110 : f32 to vector<24x32xf32>
    %322 = arith.cmpf oge, %320, %321 : vector<24x32xf32>
    %323 = vector.broadcast %2 : vector<1x32xf32> to vector<24x32xf32>
    %324 = arith.mulf %323, %320 : vector<24x32xf32>
    %325 = arith.select %322, %320, %324 : vector<24x32xi1>, vector<24x32xf32>
    %326 = vector.extract_strided_slice %31 {offsets = [24, 0], sizes = [24, 32], strides = [1, 1]} : vector<48x32xf32> to vector<24x32xf32>
    %327 = vector.extract_strided_slice %37 {offsets = [24, 0], sizes = [24, 2], strides = [1, 1]} : vector<48x2xf32> to vector<24x2xf32>
    %328 = arith.truncf %7 : vector<2x32xf32> to vector<2x32xbf16>
    %329 = arith.truncf %326 : vector<24x32xf32> to vector<24x32xbf16>
    %cst_111 = arith.constant dense<0.000000e+00> : vector<2x24xf32>
    %330 = tpu.matmul %328, %329, %cst_111 {dimension_numbers = #tpu.dot_dimension_numbers<[1], [1], [0], [0], [0, 0, 1, 0], [], []>} : vector<2x32xbf16>, vector<24x32xbf16>, vector<2x24xf32> -> vector<2x24xf32>
    %cst_112 = arith.constant 0.000000e+00 : f32
    %331 = vector.broadcast %cst_112 : f32 to vector<24x32xf32>
    %332 = vector.extract_strided_slice %327 {offsets = [0, 0], sizes = [24, 1], strides = [1, 1]} : vector<24x2xf32> to vector<24x1xf32>
    %333 = vector.extract_strided_slice %330 {offsets = [0, 0], sizes = [1, 24], strides = [1, 1]} : vector<2x24xf32> to vector<1x24xf32>
    %334 = vector.broadcast %332 : vector<24x1xf32> to vector<24x24xf32>
    %335 = vector.broadcast %333 : vector<1x24xf32> to vector<24x24xf32>
    %336 = arith.addf %334, %335 : vector<24x24xf32>
    %cst_113 = arith.constant 0.000000e+00 : f32
    %337 = vector.broadcast %cst_113 : f32 to vector<24x24xf32>
    %338 = arith.cmpf ogt, %336, %337 : vector<24x24xf32>
    %cst_114 = arith.constant 2.000000e-01 : f32
    %339 = vector.broadcast %cst_114 : f32 to vector<24x24xf32>
    %340 = arith.mulf %339, %336 : vector<24x24xf32>
    %341 = arith.select %338, %336, %340 : vector<24x24xi1>, vector<24x24xf32>
    %cst_115 = arith.constant 0.000000e+00 : f32
    %342 = vector.broadcast %cst_115 : f32 to vector<24x24xf32>
    %343 = arith.cmpf ogt, %40, %342 : vector<24x24xf32>
    %cst_116 = arith.constant -1.000000e+30 : f32
    %344 = vector.broadcast %cst_116 : f32 to vector<24x24xf32>
    %345 = arith.select %343, %341, %344 : vector<24x24xi1>, vector<24x24xf32>
    %cst_117 = arith.constant dense<0xFF800000> : vector<24xf32>
    %346 = vector.multi_reduction <maximumf>, %345, %cst_117 [1] : vector<24x24xf32> to vector<24xf32>
    %347 = vector.shape_cast %346 : vector<24xf32> to vector<24x1xf32>
    %cst_118 = arith.constant 0.000000e+00 : f32
    %348 = vector.broadcast %cst_118 : f32 to vector<24x24xf32>
    %349 = arith.cmpf ogt, %40, %348 : vector<24x24xf32>
    %350 = vector.broadcast %347 : vector<24x1xf32> to vector<24x24xf32>
    %351 = arith.subf %345, %350 : vector<24x24xf32>
    %352 = math.exp %351 : vector<24x24xf32>
    %cst_119 = arith.constant 0.000000e+00 : f32
    %353 = vector.broadcast %cst_119 : f32 to vector<24x24xf32>
    %354 = arith.select %349, %352, %353 : vector<24x24xi1>, vector<24x24xf32>
    %cst_120 = arith.constant dense<0.000000e+00> : vector<24xf32>
    %355 = vector.multi_reduction <add>, %354, %cst_120 [1] : vector<24x24xf32> to vector<24xf32>
    %356 = vector.shape_cast %355 : vector<24xf32> to vector<24x1xf32>
    %cst_121 = arith.constant 1.000000e-16 : f32
    %357 = vector.broadcast %cst_121 : f32 to vector<24x1xf32>
    %358 = arith.maximumf %356, %357 : vector<24x1xf32>
    %359 = tpu.reciprocal %358 {approx = true} : vector<24x1xf32> -> vector<24x1xf32>
    %360 = vector.broadcast %359 : vector<24x1xf32> to vector<24x24xf32>
    %361 = arith.mulf %354, %360 : vector<24x24xf32>
    %362 = arith.truncf %361 : vector<24x24xf32> to vector<24x24xbf16>
    %363 = arith.truncf %326 : vector<24x32xf32> to vector<24x32xbf16>
    %cst_122 = arith.constant dense<0.000000e+00> : vector<24x32xf32>
    %364 = tpu.matmul %362, %363, %cst_122 {dimension_numbers = #tpu.dot_dimension_numbers<[1], [0], [0], [1], [0, 0, 1, 1], [], []>} : vector<24x24xbf16>, vector<24x32xbf16>, vector<24x32xf32> -> vector<24x32xf32>
    %c0_i32_123 = arith.constant 0 : i32
    %365 = vector.broadcast %c0_i32_123 : i32 to vector<1x32xi32>
    %366 = arith.cmpi sge, %38, %365 : vector<1x32xi32>
    %c16_i32_124 = arith.constant 16 : i32
    %367 = vector.broadcast %c16_i32_124 : i32 to vector<1x32xi32>
    %368 = arith.cmpi slt, %38, %367 : vector<1x32xi32>
    %369 = arith.andi %366, %368 : vector<1x32xi1>
    %370 = vector.shape_cast %369 : vector<1x32xi1> to vector<1x32xi1>
    %371 = vector.broadcast %370 : vector<1x32xi1> to vector<24x32xi1>
    %372 = arith.select %371, %364, %331 : vector<24x32xi1>, vector<24x32xf32>
    %373 = vector.extract_strided_slice %327 {offsets = [0, 1], sizes = [24, 1], strides = [1, 1]} : vector<24x2xf32> to vector<24x1xf32>
    %374 = vector.extract_strided_slice %330 {offsets = [1, 0], sizes = [1, 24], strides = [1, 1]} : vector<2x24xf32> to vector<1x24xf32>
    %375 = vector.broadcast %373 : vector<24x1xf32> to vector<24x24xf32>
    %376 = vector.broadcast %374 : vector<1x24xf32> to vector<24x24xf32>
    %377 = arith.addf %375, %376 : vector<24x24xf32>
    %cst_125 = arith.constant 0.000000e+00 : f32
    %378 = vector.broadcast %cst_125 : f32 to vector<24x24xf32>
    %379 = arith.cmpf ogt, %377, %378 : vector<24x24xf32>
    %cst_126 = arith.constant 2.000000e-01 : f32
    %380 = vector.broadcast %cst_126 : f32 to vector<24x24xf32>
    %381 = arith.mulf %380, %377 : vector<24x24xf32>
    %382 = arith.select %379, %377, %381 : vector<24x24xi1>, vector<24x24xf32>
    %cst_127 = arith.constant 0.000000e+00 : f32
    %383 = vector.broadcast %cst_127 : f32 to vector<24x24xf32>
    %384 = arith.cmpf ogt, %40, %383 : vector<24x24xf32>
    %cst_128 = arith.constant -1.000000e+30 : f32
    %385 = vector.broadcast %cst_128 : f32 to vector<24x24xf32>
    %386 = arith.select %384, %382, %385 : vector<24x24xi1>, vector<24x24xf32>
    %cst_129 = arith.constant dense<0xFF800000> : vector<24xf32>
    %387 = vector.multi_reduction <maximumf>, %386, %cst_129 [1] : vector<24x24xf32> to vector<24xf32>
    %388 = vector.shape_cast %387 : vector<24xf32> to vector<24x1xf32>
    %cst_130 = arith.constant 0.000000e+00 : f32
    %389 = vector.broadcast %cst_130 : f32 to vector<24x24xf32>
    %390 = arith.cmpf ogt, %40, %389 : vector<24x24xf32>
    %391 = vector.broadcast %388 : vector<24x1xf32> to vector<24x24xf32>
    %392 = arith.subf %386, %391 : vector<24x24xf32>
    %393 = math.exp %392 : vector<24x24xf32>
    %cst_131 = arith.constant 0.000000e+00 : f32
    %394 = vector.broadcast %cst_131 : f32 to vector<24x24xf32>
    %395 = arith.select %390, %393, %394 : vector<24x24xi1>, vector<24x24xf32>
    %cst_132 = arith.constant dense<0.000000e+00> : vector<24xf32>
    %396 = vector.multi_reduction <add>, %395, %cst_132 [1] : vector<24x24xf32> to vector<24xf32>
    %397 = vector.shape_cast %396 : vector<24xf32> to vector<24x1xf32>
    %cst_133 = arith.constant 1.000000e-16 : f32
    %398 = vector.broadcast %cst_133 : f32 to vector<24x1xf32>
    %399 = arith.maximumf %397, %398 : vector<24x1xf32>
    %400 = tpu.reciprocal %399 {approx = true} : vector<24x1xf32> -> vector<24x1xf32>
    %401 = vector.broadcast %400 : vector<24x1xf32> to vector<24x24xf32>
    %402 = arith.mulf %395, %401 : vector<24x24xf32>
    %403 = arith.truncf %402 : vector<24x24xf32> to vector<24x24xbf16>
    %404 = arith.truncf %326 : vector<24x32xf32> to vector<24x32xbf16>
    %cst_134 = arith.constant dense<0.000000e+00> : vector<24x32xf32>
    %405 = tpu.matmul %403, %404, %cst_134 {dimension_numbers = #tpu.dot_dimension_numbers<[1], [0], [0], [1], [0, 0, 1, 1], [], []>} : vector<24x24xbf16>, vector<24x32xbf16>, vector<24x32xf32> -> vector<24x32xf32>
    %c16_i32_135 = arith.constant 16 : i32
    %406 = vector.broadcast %c16_i32_135 : i32 to vector<1x32xi32>
    %407 = arith.cmpi sge, %38, %406 : vector<1x32xi32>
    %c32_i32_136 = arith.constant 32 : i32
    %408 = vector.broadcast %c32_i32_136 : i32 to vector<1x32xi32>
    %409 = arith.cmpi slt, %38, %408 : vector<1x32xi32>
    %410 = arith.andi %407, %409 : vector<1x32xi1>
    %411 = vector.shape_cast %410 : vector<1x32xi1> to vector<1x32xi1>
    %412 = vector.broadcast %411 : vector<1x32xi1> to vector<24x32xi1>
    %413 = arith.select %412, %405, %372 : vector<24x32xi1>, vector<24x32xf32>
    %414 = vector.broadcast %5 : vector<1x32xf32> to vector<24x32xf32>
    %415 = arith.addf %413, %414 : vector<24x32xf32>
    %cst_137 = arith.constant 0.000000e+00 : f32
    %416 = vector.broadcast %cst_137 : f32 to vector<24x32xf32>
    %417 = arith.cmpf oge, %415, %416 : vector<24x32xf32>
    %418 = vector.broadcast %2 : vector<1x32xf32> to vector<24x32xf32>
    %419 = arith.mulf %418, %415 : vector<24x32xf32>
    %420 = arith.select %417, %415, %419 : vector<24x32xi1>, vector<24x32xf32>
    %421 = tpu.concatenate %325, %135, %420, %230 in 1 : vector<24x32xf32>, vector<24x32xf32>, vector<24x32xf32>, vector<24x32xf32> -> vector<24x128xf32>
    %c0_138 = arith.constant 0 : index
    %c0_139 = arith.constant 0 : index
    %422 = vector.load %arg10[%c0_138, %c0_139] : memref<24x128xf32, #tpu.memory_space<vmem>>, vector<24x128xf32>
    tpu.vector_store %arg10[%c0_138, %c0_139], %421 {strides = array<i32>} : memref<24x128xf32, #tpu.memory_space<vmem>>, vector<24x128xf32>,
    %423 = tpu.iota {dimensions = array<i32: 0>} : vector<24x1xi32>
    %c16_i32_140 = arith.constant 16 : i32
    %424 = vector.broadcast %c16_i32_140 : i32 to vector<24x1xi32>
    %425 = arith.cmpi slt, %423, %424 : vector<24x1xi32>
    %cst_141 = arith.constant 6.250000e-02 : f32
    %cst_142 = arith.constant 0.000000e+00 : f32
    %426 = vector.broadcast %cst_141 : f32 to vector<24x1xf32>
    %427 = vector.broadcast %cst_142 : f32 to vector<24x1xf32>
    %428 = arith.select %425, %426, %427 : vector<24x1xi1>, vector<24x1xf32>
    %c24_i32 = arith.constant 24 : i32
    %429 = vector.broadcast %c24_i32 : i32 to vector<24x1xi32>
    %430 = arith.cmpi slt, %423, %429 : vector<24x1xi32>
    %cst_143 = arith.constant 0.0416666679 : f32
    %cst_144 = arith.constant 0.000000e+00 : f32
    %431 = vector.broadcast %cst_143 : f32 to vector<24x1xf32>
    %432 = vector.broadcast %cst_144 : f32 to vector<24x1xf32>
    %433 = arith.select %430, %431, %432 : vector<24x1xi1>, vector<24x1xf32>
    %434 = vector.broadcast %428 : vector<24x1xf32> to vector<24x32xf32>
    %435 = arith.mulf %325, %434 : vector<24x32xf32>
    %cst_145 = arith.constant dense<0.000000e+00> : vector<32xf32>
    %436 = vector.multi_reduction <add>, %435, %cst_145 [0] : vector<24x32xf32> to vector<32xf32>
    %437 = vector.shape_cast %436 : vector<32xf32> to vector<1x32xf32>
    %438 = vector.broadcast %433 : vector<24x1xf32> to vector<24x32xf32>
    %439 = arith.mulf %135, %438 : vector<24x32xf32>
    %cst_146 = arith.constant dense<0.000000e+00> : vector<32xf32>
    %440 = vector.multi_reduction <add>, %439, %cst_146 [0] : vector<24x32xf32> to vector<32xf32>
    %441 = vector.shape_cast %440 : vector<32xf32> to vector<1x32xf32>
    %442 = arith.addf %437, %441 : vector<1x32xf32>
    %cst_147 = arith.constant 5.000000e-01 : f32
    %443 = vector.broadcast %cst_147 : f32 to vector<1x32xf32>
    %444 = arith.mulf %443, %442 : vector<1x32xf32>
    %cst_148 = arith.constant 0.000000e+00 : f32
    %445 = vector.broadcast %cst_148 : f32 to vector<1x32xf32>
    %446 = arith.subf %445, %444 : vector<1x32xf32>
    %447 = math.exp %446 : vector<1x32xf32>
    %cst_149 = arith.constant 1.000000e+00 : f32
    %448 = vector.broadcast %cst_149 : f32 to vector<1x32xf32>
    %449 = arith.addf %448, %447 : vector<1x32xf32>
    %cst_150 = arith.constant 1.000000e+00 : f32
    %450 = vector.broadcast %cst_150 : f32 to vector<1x32xf32>
    %451 = arith.divf %450, %449 : vector<1x32xf32>
    %c0_151 = arith.constant 0 : index
    %c0_152 = arith.constant 0 : index
    %452 = vector.load %arg11[%c0_151, %c0_152] : memref<1x32xf32, #tpu.memory_space<vmem>>, vector<1x32xf32>
    tpu.vector_store %arg11[%c0_151, %c0_152], %451 {strides = array<i32>} : memref<1x32xf32, #tpu.memory_space<vmem>>, vector<1x32xf32>,
    return
  }
}

</mosaic_0001>

<llo_original>
// kernel: lant_model_forward.1
$region0: #{lant_model_forward.1}
  #allocation0 [shape = 'u32[]', space=smem, size = 0x4, offset = 0x4, fixed_abs, tag = 'smem constant byte address 0x4 - core index']
  #allocation1 [shape = 'u32[144,128]{1,0:T(1,128)}', space=vmem, size = 0x12000, scoped, tag = 'internal scratch']
  %s0 = inlined_call_operand.vmem [shape: f32[48,8], index: 0, kind: input, shape index: {}]
  %s1 = inlined_call_operand.vmem [shape: f32[48,16], index: 1, kind: input, shape index: {}]
  %s2 = inlined_call_operand.vmem [shape: f32[24,24], index: 2, kind: input, shape index: {}]
  %s3 = inlined_call_operand.vmem [shape: f32[24,24], index: 3, kind: input, shape index: {}]
  %s4 = inlined_call_operand.vmem [shape: f32[8,32], index: 4, kind: input, shape index: {}]
  %s5 = inlined_call_operand.vmem [shape: f32[16,32], index: 5, kind: input, shape index: {}]
  %s6 = inlined_call_operand.vmem [shape: f32[32,32], index: 6, kind: input, shape index: {}]
  %s7 = inlined_call_operand.vmem [shape: f32[32,32], index: 7, kind: input, shape index: {}]
  %s8 = inlined_call_operand.vmem [shape: f32[32,4], index: 8, kind: input, shape index: {}]
  %s9 = inlined_call_operand.vmem [shape: f32[16,32], index: 9, kind: input, shape index: {}]
  %s10 = inlined_call_operand.vmem [shape: f32[24,128], index: 10, kind: output, shape index: {0}]
  %s11 = inlined_call_operand.hbm [shape: f32[1,32], index: 11, kind: output, shape index: {1}]
  %12 = xla_tuple %s10, %s11
  %s13 = sld [smem:[#allocation0]]
  $region58: #{lant_model_forward.1} parent=0
    _
  %s15 = ssub.s32 1, %s13
  %s16 = scalar_select 0, %s15, %s13
  $region1: #{lant_model_forward.1} parent=0
    #allocation2 [shape = 'u8[512]{0}', space=vmem, size = 0x400, scoped, tag = 'output window, operand 1, single buffered']
    #allocation3 [shape = 's32[1]{0}', space=sflag, size = 0x4, scoped, tag = 'scoped memory for lant_model_forward.1']
    %17 = vsyncpa [#allocation3], 0
    // Predicated region
    $region2: #{lant_model_forward.1} parent=1 // pred_check
      _
    $region3: #{lant_model_forward.1} parent=1 // pred_check_branch
      %19 = sbr.rel (0) target = $region5
    $region4: #{lant_model_forward.1} parent=1 // pred_region
      _
    $region5: #{lant_model_forward.1} parent=1 // pred_fallthru
      _
    // Predicated region
    $region6: #{lant_model_forward.1} parent=1 // pred_check
      _
    $region7: #{lant_model_forward.1} parent=1 // pred_check_branch
      %21 = sbr.rel (0) target = $region9
    $region8: #{lant_model_forward.1} parent=1 // pred_region
      _
    $region9: #{lant_model_forward.1} parent=1 // pred_fallthru
      _
    // Predicated region
    $region10: #{lant_model_forward.1} parent=1 // pred_check
      _
    $region11: #{lant_model_forward.1} parent=1 // pred_check_branch
      %23 = sbr.rel (0) target = $region13
    $region12: #{lant_model_forward.1} parent=1 // pred_region
      _
    $region13: #{lant_model_forward.1} parent=1 // pred_fallthru
      _
    // Predicated region
    $region14: #{lant_model_forward.1} parent=1 // pred_check
      _
    $region15: #{lant_model_forward.1} parent=1 // pred_check_branch
      %25 = sbr.rel (0) target = $region17
    $region16: #{lant_model_forward.1} parent=1 // pred_region
      _
    $region17: #{lant_model_forward.1} parent=1 // pred_fallthru
      _
    // Predicated region
    $region18: #{lant_model_forward.1} parent=1 // pred_check
      _
    $region19: #{lant_model_forward.1} parent=1 // pred_check_branch
      %27 = sbr.rel (0) target = $region21
    $region20: #{lant_model_forward.1} parent=1 // pred_region
      _
    $region21: #{lant_model_forward.1} parent=1 // pred_fallthru
      _
    // Predicated region
    $region22: #{lant_model_forward.1} parent=1 // pred_check
      _
    $region23: #{lant_model_forward.1} parent=1 // pred_check_branch
      %29 = sbr.rel (0) target = $region25
    $region24: #{lant_model_forward.1} parent=1 // pred_region
      _
    $region25: #{lant_model_forward.1} parent=1 // pred_fallthru
      _
    // Predicated region
    $region26: #{lant_model_forward.1} parent=1 // pred_check
      _
    $region27: #{lant_model_forward.1} parent=1 // pred_check_branch
      %31 = sbr.rel (0) target = $region29
    $region28: #{lant_model_forward.1} parent=1 // pred_region
      _
    $region29: #{lant_model_forward.1} parent=1 // pred_fallthru
      _
    // Predicated region
    $region30: #{lant_model_forward.1} parent=1 // pred_check
      _
    $region31: #{lant_model_forward.1} parent=1 // pred_check_branch
      %33 = sbr.rel (0) target = $region33
    $region32: #{lant_model_forward.1} parent=1 // pred_region
      _
    $region33: #{lant_model_forward.1} parent=1 // pred_fallthru
      _
    // Predicated region
    $region34: #{lant_model_forward.1} parent=1 // pred_check
      _
    $region35: #{lant_model_forward.1} parent=1 // pred_check_branch
      %35 = sbr.rel (0) target = $region37
    $region36: #{lant_model_forward.1} parent=1 // pred_region
      _
    $region37: #{lant_model_forward.1} parent=1 // pred_fallthru
      _
    // Predicated region
    $region38: #{lant_model_forward.1} parent=1 // pred_check
      _
    $region39: #{lant_model_forward.1} parent=1 // pred_check_branch
      %37 = sbr.rel (0) target = $region41
    $region40: #{lant_model_forward.1} parent=1 // pred_region
      _
    $region41: #{lant_model_forward.1} parent=1 // pred_fallthru
      _
    %v39 = vld [vmem:[%s9] sm:$0x1]
    %v40 = vld [vmem:[%s9 + $0x1] sm:$0x1]
    %v41 = vld [vmem:[%s9 + $0x2] sm:$0x1]
    %v42 = vld [vmem:[%s9 + $0x3] sm:$0x1]
    %v43 = vld [vmem:[%s9 + $0x4] sm:$0x1]
    %v44 = vld [vmem:[%s9 + $0x5] sm:$0x1]
    %v45 = vld [vmem:[%s9 + $0x6] sm:$0x3]
    %v46 = vld [vmem:[%s9 + $0x8] sm:$0x3]
    %v47 = vld [vmem:[%s8] sm:$0xff]
    %v48 = vld [vmem:[%s8 + $0x8] sm:$0xff]
    %v49 = vld [vmem:[%s8 + $0x10] sm:$0xff]
    %v50 = vld [vmem:[%s8 + $0x18] sm:$0xff]
    %v51 = vld [vmem:[%s0] sm:$0xff]
    %v52 = vld [vmem:[%s0 + $0x8] sm:$0xff]
    %v53 = vld [vmem:[%s0 + $0x10] sm:$0xff]
    %v54 = vld [vmem:[%s0 + $0x18] sm:$0xff]
    %v55 = vld [vmem:[%s0 + $0x20] sm:$0xff]
    %v56 = vld [vmem:[%s0 + $0x28] sm:$0xff]
    %v57 = vld [vmem:[%s4] sm:$0xff]
    %v58 = vpack.c.bf16 %v52, %v51
    %v59 = vpack.c.bf16 %v54, %v53
    %v60 = vpack.c.bf16 %v56, %v55
    %v61 = vpack.c.bf16 %v57, %v57
    %v62 = vlaneseq
    %v63 = vshrl.u32 %v62, 7
    %v64 = vsub.s32 0, %v63
    %v65 = vrot.slane %v39, %v64
    %vm66 = vcmask 64512
    %v68 = vsel %vm66, %v58, 0
    %v71 = vsel %vm66, %v59, 0
    %v74 = vsel %vm66, %v60, 0
    %vm76 = vcmask 1043456
    %v78 = vsel %vm76, %v61, 0
    %80 = vmatprep.subr.bf16.mxu0 0
    %81 = vmatpush1.bf16.msra.mxu0 %v78
    %82 = vmatprep.subr.bf16.mxu0 0
    %83 = vmatpush1.bf16.msra.mxu0 0
    %84 = vmatprep.subr.bf16.mxu0 0
    %85 = vmatpush1.bf16.msra.mxu0 0
    %86 = vmatprep.subr.bf16.mxu0 0
    %87 = vmatpush1.bf16.msra.mxu0 0
    %88 = vmatprep.subr.bf16.mxu0 0
    %89 = vmatpush1.bf16.msra.mxu0 0
    %90 = vmatprep.subr.bf16.mxu0 0
    %91 = vmatpush1.bf16.msra.mxu0 0
    %92 = vmatprep.subr.bf16.mxu0 0
    %93 = vmatpush1.bf16.msra.mxu0 0
    %94 = vmatprep.subr.bf16.mxu0 0
    %95 = vmatpush1.bf16.msra.mxu0 0
    %96 = vmatprep.subr.bf16.mxu0 0
    %97 = vmatpush1.bf16.msra.mxu0 0
    %98 = vmatprep.subr.bf16.mxu0 0
    %99 = vmatpush1.bf16.msra.mxu0 0
    %100 = vmatprep.subr.bf16.mxu0 0
    %101 = vmatpush1.bf16.msra.mxu0 0
    %102 = vmatprep.subr.bf16.mxu0 0
    %103 = vmatpush1.bf16.msra.mxu0 0
    %104 = vmatprep.subr.bf16.mxu0 0
    %105 = vmatpush1.bf16.msra.mxu0 0
    %106 = vmatprep.subr.bf16.mxu0 0
    %107 = vmatpush1.bf16.msra.mxu0 0
    %108 = vmatprep.subr.bf16.mxu0 0
    %109 = vmatpush1.bf16.msra.mxu0 0
    %110 = vmatprep.subr.bf16.mxu0 0
    %111 = vmatpush1.bf16.msra.mxu0 0
    %112 = vmatprep.mubr.bf16.mxu0 0
    %113 = vmatmul.mubr.bf16.gmra.mrb[0].mxu0 %v68
    %v114 = vpop.f32.mrb[0].mxu0
    %v115 = vadd.f32 %v65, %v114
    %v116 = vpop.f32.mrb[0].mxu0
    %v117 = vpop.f32.mrb[0].mxu0
    %v118 = vadd.f32 %v65, %v117
    %v119 = vpop.f32.mrb[0].mxu0
    %120 = vmatprep.mubr.bf16.mxu0 0
    %121 = vmatmul.mubr.bf16.gmra.mrb[0].mxu0 %v71
    %v122 = vpop.f32.mrb[0].mxu0
    %v123 = vadd.f32 %v65, %v122
    %v124 = vpop.f32.mrb[0].mxu0
    %v125 = vpop.f32.mrb[0].mxu0
    %v126 = vadd.f32 %v65, %v125
    %v127 = vpop.f32.mrb[0].mxu0
    %128 = vmatprep.mubr.bf16.mxu0 0
    %129 = vmatmul.mubr.bf16.gmra.mrb[0].mxu0 %v74
    %v130 = vpop.f32.mrb[0].mxu0
    %v131 = vadd.f32 %v65, %v130
    %v132 = vpop.f32.mrb[0].mxu0
    %v133 = vpop.f32.mrb[0].mxu0
    %v134 = vadd.f32 %v65, %v133
    %v135 = vpop.f32.mrb[0].mxu0
    %136 = vdwg.mxu0
    %v137 = vld [vmem:[%s1] sm:$0xff]
    %v138 = vld [vmem:[%s1 + $0x8] sm:$0xff]
    %v139 = vld [vmem:[%s1 + $0x10] sm:$0xff]
    %v140 = vld [vmem:[%s1 + $0x18] sm:$0xff]
    %v141 = vld [vmem:[%s1 + $0x20] sm:$0xff]
    %v142 = vld [vmem:[%s1 + $0x28] sm:$0xff]
    %v143 = vld [vmem:[%s5] sm:$0xff]
    %v144 = vld [vmem:[%s5 + $0x8] sm:$0xff]
    %v145 = vpack.c.bf16 %v138, %v137
    %v146 = vpack.c.bf16 %v140, %v139
    %v147 = vpack.c.bf16 %v142, %v141
    %v148 = vpack.c.bf16 %v144, %v143
    %v149 = vlaneseq
    %v150 = vshrl.u32 %v149, 7
    %v151 = vsub.s32 0, %v150
    %v152 = vrot.slane %v40, %v151
    %vm153 = vcmask 130048
    %v155 = vsel %vm153, %v145, 0
    %v158 = vsel %vm153, %v146, 0
    %v161 = vsel %vm153, %v147, 0
    %163 = vmatprep.subr.bf16.mxu0 0
    %164 = vmatpush1.bf16.msra.mxu0 %v148
    %165 = vmatprep.subr.bf16.mxu0 0
    %166 = vmatpush1.bf16.msra.mxu0 0
    %167 = vmatprep.subr.bf16.mxu0 0
    %168 = vmatpush1.bf16.msra.mxu0 0
    %169 = vmatprep.subr.bf16.mxu0 0
    %170 = vmatpush1.bf16.msra.mxu0 0
    %171 = vmatprep.subr.bf16.mxu0 0
    %172 = vmatpush1.bf16.msra.mxu0 0
    %173 = vmatprep.subr.bf16.mxu0 0
    %174 = vmatpush1.bf16.msra.mxu0 0
    %175 = vmatprep.subr.bf16.mxu0 0
    %176 = vmatpush1.bf16.msra.mxu0 0
    %177 = vmatprep.subr.bf16.mxu0 0
    %178 = vmatpush1.bf16.msra.mxu0 0
    %179 = vmatprep.subr.bf16.mxu0 0
    %180 = vmatpush1.bf16.msra.mxu0 0
    %181 = vmatprep.subr.bf16.mxu0 0
    %182 = vmatpush1.bf16.msra.mxu0 0
    %183 = vmatprep.subr.bf16.mxu0 0
    %184 = vmatpush1.bf16.msra.mxu0 0
    %185 = vmatprep.subr.bf16.mxu0 0
    %186 = vmatpush1.bf16.msra.mxu0 0
    %187 = vmatprep.subr.bf16.mxu0 0
    %188 = vmatpush1.bf16.msra.mxu0 0
    %189 = vmatprep.subr.bf16.mxu0 0
    %190 = vmatpush1.bf16.msra.mxu0 0
    %191 = vmatprep.subr.bf16.mxu0 0
    %192 = vmatpush1.bf16.msra.mxu0 0
    %193 = vmatprep.subr.bf16.mxu0 0
    %194 = vmatpush1.bf16.msra.mxu0 0
    %195 = vmatprep.mubr.bf16.mxu0 0
    %196 = vmatmul.mubr.bf16.gmra.mrb[0].mxu0 %v155
    %v197 = vpop.f32.mrb[0].mxu0
    %v198 = vadd.f32 %v152, %v197
    %v199 = vpop.f32.mrb[0].mxu0
    %v200 = vpop.f32.mrb[0].mxu0
    %v201 = vadd.f32 %v152, %v200
    %v202 = vpop.f32.mrb[0].mxu0
    %203 = vmatprep.mubr.bf16.mxu0 0
    %204 = vmatmul.mubr.bf16.gmra.mrb[0].mxu0 %v158
    %v205 = vpop.f32.mrb[0].mxu0
    %v206 = vadd.f32 %v152, %v205
    %v207 = vpop.f32.mrb[0].mxu0
    %v208 = vpop.f32.mrb[0].mxu0
    %v209 = vadd.f32 %v152, %v208
    %v210 = vpop.f32.mrb[0].mxu0
    %211 = vmatprep.mubr.bf16.mxu0 0
    %212 = vmatmul.mubr.bf16.gmra.mrb[0].mxu0 %v161
    %v213 = vpop.f32.mrb[0].mxu0
    %v214 = vadd.f32 %v152, %v213
    %v215 = vpop.f32.mrb[0].mxu0
    %v216 = vpop.f32.mrb[0].mxu0
    %v217 = vadd.f32 %v152, %v216
    %v218 = vpop.f32.mrb[0].mxu0
    %219 = vdwg.mxu0
    %v220 = vld [vmem:[%s6] sm:$0xff]
    %v221 = vld [vmem:[%s6 + $0x8] sm:$0xff]
    %v222 = vld [vmem:[%s6 + $0x10] sm:$0xff]
    %v223 = vld [vmem:[%s6 + $0x18] sm:$0xff]
    %v224 = vpack.c.bf16 %v118, %v115
    %v225 = vpack.c.bf16 %v126, %v123
    %v226 = vpack.c.bf16 %v134, %v131
    %v227 = vpack.c.bf16 %v221, %v220
    %v228 = vpack.c.bf16 %v223, %v222
    %vm229 = vcmask 261120
    %v231 = vsel %vm229, %v224, 0
    %v234 = vsel %vm229, %v225, 0
    %v237 = vsel %vm229, %v226, 0
    %239 = vmatprep.subr.bf16.mxu0 0
    %240 = vmatpush1.bf16.msra.mxu0 %v227
    %241 = vmatprep.subr.bf16.mxu0 0
    %242 = vmatpush1.bf16.msra.mxu0 %v228
    %243 = vmatprep.subr.bf16.mxu0 0
    %244 = vmatpush1.bf16.msra.mxu0 0
    %245 = vmatprep.subr.bf16.mxu0 0
    %246 = vmatpush1.bf16.msra.mxu0 0
    %247 = vmatprep.subr.bf16.mxu0 0
    %248 = vmatpush1.bf16.msra.mxu0 0
    %249 = vmatprep.subr.bf16.mxu0 0
    %250 = vmatpush1.bf16.msra.mxu0 0
    %251 = vmatprep.subr.bf16.mxu0 0
    %252 = vmatpush1.bf16.msra.mxu0 0
    %253 = vmatprep.subr.bf16.mxu0 0
    %254 = vmatpush1.bf16.msra.mxu0 0
    %255 = vmatprep.subr.bf16.mxu0 0
    %256 = vmatpush1.bf16.msra.mxu0 0
    %257 = vmatprep.subr.bf16.mxu0 0
    %258 = vmatpush1.bf16.msra.mxu0 0
    %259 = vmatprep.subr.bf16.mxu0 0
    %260 = vmatpush1.bf16.msra.mxu0 0
    %261 = vmatprep.subr.bf16.mxu0 0
    %262 = vmatpush1.bf16.msra.mxu0 0
    %263 = vmatprep.subr.bf16.mxu0 0
    %264 = vmatpush1.bf16.msra.mxu0 0
    %265 = vmatprep.subr.bf16.mxu0 0
    %266 = vmatpush1.bf16.msra.mxu0 0
    %267 = vmatprep.subr.bf16.mxu0 0
    %268 = vmatpush1.bf16.msra.mxu0 0
    %269 = vmatprep.subr.bf16.mxu0 0
    %270 = vmatpush1.bf16.msra.mxu0 0
    %271 = vmatprep.mubr.bf16.mxu0 0
    %272 = vmatmul.mubr.bf16.gmra.mrb[0].mxu0 %v231
    %v273 = vpop.f32.mrb[0].mxu0
    %v274 = vadd.f32 0.0, %v273
    %v275 = vpop.f32.mrb[0].mxu0
    %v276 = vpop.f32.mrb[0].mxu0
    %v277 = vadd.f32 0.0, %v276
    %v278 = vpop.f32.mrb[0].mxu0
    %279 = vmatprep.mubr.bf16.mxu0 0
    %280 = vmatmul.mubr.bf16.gmra.mrb[0].mxu0 %v234
    %v281 = vpop.f32.mrb[0].mxu0
    %v282 = vadd.f32 0.0, %v281
    %v283 = vpop.f32.mrb[0].mxu0
    %v284 = vpop.f32.mrb[0].mxu0
    %v285 = vadd.f32 0.0, %v284
    %v286 = vpop.f32.mrb[0].mxu0
    %287 = vmatprep.mubr.bf16.mxu0 0
    %288 = vmatmul.mubr.bf16.gmra.mrb[0].mxu0 %v237
    %v289 = vpop.f32.mrb[0].mxu0
    %v290 = vadd.f32 0.0, %v289
    %v291 = vpop.f32.mrb[0].mxu0
    %v292 = vpop.f32.mrb[0].mxu0
    %v293 = vadd.f32 0.0, %v292
    %v294 = vpop.f32.mrb[0].mxu0
    %295 = vdwg.mxu0
    %v296 = vld [vmem:[%s7] sm:$0xff]
    %v297 = vld [vmem:[%s7 + $0x8] sm:$0xff]
    %v298 = vld [vmem:[%s7 + $0x10] sm:$0xff]
    %v299 = vld [vmem:[%s7 + $0x18] sm:$0xff]
    %v300 = vpack.c.bf16 %v201, %v198
    %v301 = vpack.c.bf16 %v209, %v206
    %v302 = vpack.c.bf16 %v217, %v214
    %v303 = vpack.c.bf16 %v297, %v296
    %v304 = vpack.c.bf16 %v299, %v298
    %v306 = vsel %vm229, %v300, 0
    %v309 = vsel %vm229, %v301, 0
    %v312 = vsel %vm229, %v302, 0
    %314 = vmatprep.subr.bf16.mxu0 0
    %315 = vmatpush1.bf16.msra.mxu0 %v303
    %316 = vmatprep.subr.bf16.mxu0 0
    %317 = vmatpush1.bf16.msra.mxu0 %v304
    %318 = vmatprep.subr.bf16.mxu0 0
    %319 = vmatpush1.bf16.msra.mxu0 0
    %320 = vmatprep.subr.bf16.mxu0 0
    %321 = vmatpush1.bf16.msra.mxu0 0
    %322 = vmatprep.subr.bf16.mxu0 0
    %323 = vmatpush1.bf16.msra.mxu0 0
    %324 = vmatprep.subr.bf16.mxu0 0
    %325 = vmatpush1.bf16.msra.mxu0 0
    %326 = vmatprep.subr.bf16.mxu0 0
    %327 = vmatpush1.bf16.msra.mxu0 0
    %328 = vmatprep.subr.bf16.mxu0 0
    %329 = vmatpush1.bf16.msra.mxu0 0
    %330 = vmatprep.subr.bf16.mxu0 0
    %331 = vmatpush1.bf16.msra.mxu0 0
    %332 = vmatprep.subr.bf16.mxu0 0
    %333 = vmatpush1.bf16.msra.mxu0 0
    %334 = vmatprep.subr.bf16.mxu0 0
    %335 = vmatpush1.bf16.msra.mxu0 0
    %336 = vmatprep.subr.bf16.mxu0 0
    %337 = vmatpush1.bf16.msra.mxu0 0
    %338 = vmatprep.subr.bf16.mxu0 0
    %339 = vmatpush1.bf16.msra.mxu0 0
    %340 = vmatprep.subr.bf16.mxu0 0
    %341 = vmatpush1.bf16.msra.mxu0 0
    %342 = vmatprep.subr.bf16.mxu0 0
    %343 = vmatpush1.bf16.msra.mxu0 0
    %344 = vmatprep.subr.bf16.mxu0 0
    %345 = vmatpush1.bf16.msra.mxu0 0
    %346 = vmatprep.mubr.bf16.mxu0 0
    %347 = vmatmul.mubr.bf16.gmra.mrb[0].mxu0 %v306
    %v348 = vpop.f32.mrb[0].mxu0
    %v349 = vadd.f32 0.0, %v348
    %v350 = vpop.f32.mrb[0].mxu0
    %v351 = vpop.f32.mrb[0].mxu0
    %v352 = vadd.f32 0.0, %v351
    %v353 = vpop.f32.mrb[0].mxu0
    %354 = vmatprep.mubr.bf16.mxu0 0
    %355 = vmatmul.mubr.bf16.gmra.mrb[0].mxu0 %v309
    %v356 = vpop.f32.mrb[0].mxu0
    %v357 = vadd.f32 0.0, %v356
    %v358 = vpop.f32.mrb[0].mxu0
    %v359 = vpop.f32.mrb[0].mxu0
    %v360 = vadd.f32 0.0, %v359
    %v361 = vpop.f32.mrb[0].mxu0
    %362 = vmatprep.mubr.bf16.mxu0 0
    %363 = vmatmul.mubr.bf16.gmra.mrb[0].mxu0 %v312
    %v364 = vpop.f32.mrb[0].mxu0
    %v365 = vadd.f32 0.0, %v364
    %v366 = vpop.f32.mrb[0].mxu0
    %v367 = vpop.f32.mrb[0].mxu0
    %v368 = vadd.f32 0.0, %v367
    %v369 = vpop.f32.mrb[0].mxu0
    %370 = vdwg.mxu0
    %v371 = vpack.c.bf16 %v48, %v47
    %v372 = vpack.c.bf16 %v50, %v49
    %373 = vmatprep.subr.bf16.mxu0 0
    %374 = vmatpush1.bf16.msra.mxu0 %v371
    %375 = vmatprep.subr.bf16.mxu0 0
    %376 = vmatpush1.bf16.msra.mxu0 %v372
    %377 = vmatprep.subr.bf16.mxu0 0
    %378 = vmatpush1.bf16.msra.mxu0 0
    %379 = vmatprep.subr.bf16.mxu0 0
    %380 = vmatpush1.bf16.msra.mxu0 0
    %381 = vmatprep.subr.bf16.mxu0 0
    %382 = vmatpush1.bf16.msra.mxu0 0
    %383 = vmatprep.subr.bf16.mxu0 0
    %384 = vmatpush1.bf16.msra.mxu0 0
    %385 = vmatprep.subr.bf16.mxu0 0
    %386 = vmatpush1.bf16.msra.mxu0 0
    %387 = vmatprep.subr.bf16.mxu0 0
    %388 = vmatpush1.bf16.msra.mxu0 0
    %389 = vmatprep.subr.bf16.mxu0 0
    %390 = vmatpush1.bf16.msra.mxu0 0
    %391 = vmatprep.subr.bf16.mxu0 0
    %392 = vmatpush1.bf16.msra.mxu0 0
    %393 = vmatprep.subr.bf16.mxu0 0
    %394 = vmatpush1.bf16.msra.mxu0 0
    %395 = vmatprep.subr.bf16.mxu0 0
    %396 = vmatpush1.bf16.msra.mxu0 0
    %397 = vmatprep.subr.bf16.mxu0 0
    %398 = vmatpush1.bf16.msra.mxu0 0
    %399 = vmatprep.subr.bf16.mxu0 0
    %400 = vmatpush1.bf16.msra.mxu0 0
    %401 = vmatprep.subr.bf16.mxu0 0
    %402 = vmatpush1.bf16.msra.mxu0 0
    %403 = vmatprep.subr.bf16.mxu0 0
    %404 = vmatpush1.bf16.msra.mxu0 0
    %405 = vmatprep.mubr.bf16.mxu0 0
    %406 = vmatmul.mubr.bf16.gmra.mrb[0].mxu0 %v306
    %v407 = vpop.f32.mrb[0].mxu0
    %v408 = vadd.f32 0.0, %v407
    %v409 = vpop.f32.mrb[0].mxu0
    %v410 = vpop.f32.mrb[0].mxu0
    %v411 = vadd.f32 0.0, %v410
    %v412 = vpop.f32.mrb[0].mxu0
    %413 = vmatprep.mubr.bf16.mxu0 0
    %414 = vmatmul.mubr.bf16.gmra.mrb[0].mxu0 %v309
    %v415 = vpop.f32.mrb[0].mxu0
    %v416 = vadd.f32 0.0, %v415
    %v417 = vpop.f32.mrb[0].mxu0
    %v418 = vpop.f32.mrb[0].mxu0
    %v419 = vadd.f32 0.0, %v418
    %v420 = vpop.f32.mrb[0].mxu0
    %421 = vmatprep.mubr.bf16.mxu0 0
    %422 = vmatmul.mubr.bf16.gmra.mrb[0].mxu0 %v312
    %v423 = vpop.f32.mrb[0].mxu0
    %v424 = vadd.f32 0.0, %v423
    %v425 = vpop.f32.mrb[0].mxu0
    %v426 = vpop.f32.mrb[0].mxu0
    %v427 = vadd.f32 0.0, %v426
    %v428 = vpop.f32.mrb[0].mxu0
    %429 = vdwg.mxu0
    %432 = vrot.lane.b32.xlu0 %v371, 126
    %v433 = vpop.permute.xlu0 %432
    %434 = vrot.lane.b32.xlu0 %v372, 126
    %v435 = vpop.permute.xlu0 %434
    %438 = vmatprep.subr.bf16.mxu0 0
    %439 = vmatpush1.bf16.msra.mxu0 %v433
    %440 = vmatprep.subr.bf16.mxu0 0
    %441 = vmatpush1.bf16.msra.mxu0 %v435
    %442 = vmatprep.subr.bf16.mxu0 0
    %443 = vmatpush1.bf16.msra.mxu0 0
    %444 = vmatprep.subr.bf16.mxu0 0
    %445 = vmatpush1.bf16.msra.mxu0 0
    %446 = vmatprep.subr.bf16.mxu0 0
    %447 = vmatpush1.bf16.msra.mxu0 0
    %448 = vmatprep.subr.bf16.mxu0 0
    %449 = vmatpush1.bf16.msra.mxu0 0
    %450 = vmatprep.subr.bf16.mxu0 0
    %451 = vmatpush1.bf16.msra.mxu0 0
    %452 = vmatprep.subr.bf16.mxu0 0
    %453 = vmatpush1.bf16.msra.mxu0 0
    %454 = vmatprep.subr.bf16.mxu0 0
    %455 = vmatpush1.bf16.msra.mxu0 0
    %456 = vmatprep.subr.bf16.mxu0 0
    %457 = vmatpush1.bf16.msra.mxu0 0
    %458 = vmatprep.subr.bf16.mxu0 0
    %459 = vmatpush1.bf16.msra.mxu0 0
    %460 = vmatprep.subr.bf16.mxu0 0
    %461 = vmatpush1.bf16.msra.mxu0 0
    %462 = vmatprep.subr.bf16.mxu0 0
    %463 = vmatpush1.bf16.msra.mxu0 0
    %464 = vmatprep.subr.bf16.mxu0 0
    %465 = vmatpush1.bf16.msra.mxu0 0
    %466 = vmatprep.subr.bf16.mxu0 0
    %467 = vmatpush1.bf16.msra.mxu0 0
    %468 = vmatprep.subr.bf16.mxu0 0
    %469 = vmatpush1.bf16.msra.mxu0 0
    %470 = vmatprep.mubr.bf16.mxu0 0
    %471 = vmatmul.mubr.bf16.gmra.mrb[0].mxu0 %v231
    %v472 = vpop.f32.mrb[0].mxu0
    %v473 = vadd.f32 0.0, %v472
    %v474 = vpop.f32.mrb[0].mxu0
    %v475 = vpop.f32.mrb[0].mxu0
    %v476 = vadd.f32 0.0, %v475
    %v477 = vpop.f32.mrb[0].mxu0
    %478 = vmatprep.mubr.bf16.mxu0 0
    %479 = vmatmul.mubr.bf16.gmra.mrb[0].mxu0 %v234
    %v480 = vpop.f32.mrb[0].mxu0
    %v481 = vadd.f32 0.0, %v480
    %v482 = vpop.f32.mrb[0].mxu0
    %v483 = vpop.f32.mrb[0].mxu0
    %v484 = vadd.f32 0.0, %v483
    %v485 = vpop.f32.mrb[0].mxu0
    %486 = vmatprep.mubr.bf16.mxu0 0
    %487 = vmatmul.mubr.bf16.gmra.mrb[0].mxu0 %v237
    %v488 = vpop.f32.mrb[0].mxu0
    %v489 = vadd.f32 0.0, %v488
    %v490 = vpop.f32.mrb[0].mxu0
    %v491 = vpop.f32.mrb[0].mxu0
    %v492 = vadd.f32 0.0, %v491
    %v493 = vpop.f32.mrb[0].mxu0
    %494 = vdwg.mxu0
    %v495 = vlaneseq
    %v496 = vand.u32 %v495, 127
    %v497 = vld [vmem:[%s2] sm:$0xff]
    %v498 = vld [vmem:[%s2 + $0x8] sm:$0xff]
    %v499 = vld [vmem:[%s2 + $0x10] sm:$0xff]
    %v500 = vld [vmem:[%s3] sm:$0xff]
    %v501 = vld [vmem:[%s3 + $0x8] sm:$0xff]
    %v502 = vld [vmem:[%s3 + $0x10] sm:$0xff]
    %v503 = vpack.c.bf16 %v45, %v45
    %v504 = vpack.c.bf16 %v277, %v274
    %v505 = vpack.c.bf16 %v282, %v282
    %v507 = vsel %vm229, %v503, 0
    %v510 = vsel %vm229, %v504, 0
    %v513 = vsel %vm229, %v505, 0
    %515 = vmatprep.subr.bf16.mxu0 0
    %516 = vmatpush1.bf16.xpose.msra.mxu0 %v510
    %517 = vmatprep.subr.bf16.mxu0 0
    %518 = vmatpush1.bf16.xpose.msra.mxu0 %v513
    %519 = vmatprep.subr.bf16.mxu0 0
    %520 = vmatpush1.bf16.xpose.msra.mxu0 0
    %521 = vmatprep.subr.bf16.mxu0 0
    %522 = vmatpush1.bf16.xpose.msra.mxu0 0
    %523 = vmatprep.subr.bf16.mxu0 0
    %524 = vmatpush1.bf16.xpose.msra.mxu0 0
    %525 = vmatprep.subr.bf16.mxu0 0
    %526 = vmatpush1.bf16.xpose.msra.mxu0 0
    %527 = vmatprep.subr.bf16.mxu0 0
    %528 = vmatpush1.bf16.xpose.msra.mxu0 0
    %529 = vmatprep.subr.bf16.mxu0 0
    %530 = vmatpush1.bf16.xpose.msra.mxu0 0
    %531 = vmatprep.subr.bf16.mxu0 0
    %532 = vmatpush1.bf16.xpose.msra.mxu0 0
    %533 = vmatprep.subr.bf16.mxu0 0
    %534 = vmatpush1.bf16.xpose.msra.mxu0 0
    %535 = vmatprep.subr.bf16.mxu0 0
    %536 = vmatpush1.bf16.xpose.msra.mxu0 0
    %537 = vmatprep.subr.bf16.mxu0 0
    %538 = vmatpush1.bf16.xpose.msra.mxu0 0
    %539 = vmatprep.subr.bf16.mxu0 0
    %540 = vmatpush1.bf16.xpose.msra.mxu0 0
    %541 = vmatprep.subr.bf16.mxu0 0
    %542 = vmatpush1.bf16.xpose.msra.mxu0 0
    %543 = vmatprep.subr.bf16.mxu0 0
    %544 = vmatpush1.bf16.xpose.msra.mxu0 0
    %545 = vmatprep.subr.bf16.mxu0 0
    %546 = vmatpush1.bf16.xpose.msra.mxu0 0
    %547 = vmatprep.mubr.bf16.mxu0 0
    %548 = vmatmul.mubr.bf16.gmra.mrb[0].mxu0 %v507
    %v549 = vpop.f32.mrb[0].mxu0
    %v550 = vadd.f32 0.0, %v549
    %v551 = vpop.f32.mrb[0].mxu0
    %v552 = vpop.f32.mrb[0].mxu0
    %v553 = vpop.f32.mrb[0].mxu0
    %554 = vdwg.mxu0
    %556 = vset.pattern.permute.xlu0 0
    %557 = vperm.xlu0 %556, %v408
    %v558 = vpop.permute.xlu0 %557
    %561 = vset.pattern.permute.xlu0 0
    %562 = vperm.xlu0 %561, %v411
    %v563 = vpop.permute.xlu0 %562
    %566 = vset.pattern.permute.xlu0 0
    %567 = vperm.xlu0 %566, %v416
    %v568 = vpop.permute.xlu0 %567
    %v570 = vlaneseq
    %v571 = vshrl.u32 %v570, 7
    %v572 = vsub.s32 0, %v571
    %v573 = vrot.slane %v550, %v572
    %v574 = vadd.f32 %v558, %v573
    %v575 = vadd.f32 %v563, %v573
    %v576 = vadd.f32 %v568, %v573
    %vm577 = vcmp.gt.f32.partialorder %v574, 0.0
    %vm578 = vcmp.gt.f32.partialorder %v575, 0.0
    %vm579 = vcmp.gt.f32.partialorder %v576, 0.0
    %v580 = vmul.f32 %v574, 0.2
    %v581 = vmul.f32 %v575, 0.2
    %v582 = vmul.f32 %v576, 0.2
    %v583 = vsel %vm577, %v574, %v580
    %v584 = vsel %vm578, %v575, %v581
    %v585 = vsel %vm579, %v576, %v582
    %vm586 = vcmp.gt.f32.partialorder %v497, 0.0
    %vm587 = vcmp.gt.f32.partialorder %v498, 0.0
    %vm588 = vcmp.gt.f32.partialorder %v499, 0.0
    %v589 = vsel %vm586, %v583, -1e+30
    %v590 = vsel %vm587, %v584, -1e+30
    %v591 = vsel %vm588, %v585, -1e+30
    %vm592 = vcmask 195584
    %v593 = vsel %vm592, %v589, -inf
    %594 = vmax.xlane.f32.xlu0 %v593
    %v595 = vpop.xlane.xlu0 %594
    %v596 = vsel %vm592, %v590, -inf
    %597 = vmax.xlane.f32.xlu0 %v596
    %v598 = vpop.xlane.xlu0 %597
    %v599 = vsel %vm592, %v591, -inf
    %600 = vmax.xlane.f32.xlu0 %v599
    %v601 = vpop.xlane.xlu0 %600
    %v602 = vsub.f32 %v589, %v595
    %v603 = vsub.f32 %v590, %v598
    %v604 = vsub.f32 %v591, %v601
    %v605 = vmul.f32 %v602, 1.442695
    %v606 = vpow.pop %v605
    %v607 = vmul.f32 %v603, 1.442695
    %v608 = vpow.pop %v607
    %v609 = vmul.f32 %v604, 1.442695
    %v610 = vpow.pop %v609
    %v611 = vsel %vm586, %v606, 0.0
    %v612 = vsel %vm587, %v608, 0.0
    %v613 = vsel %vm588, %v610, 0.0
    %v614 = vsel %vm592, %v611, 0.0
    %615 = vadd.xlane.f32.xlu0 %v614
    %v616 = vpop.xlane.xlu0 %615
    %v617 = vsel %vm592, %v612, 0.0
    %618 = vadd.xlane.f32.xlu0 %v617
    %v619 = vpop.xlane.xlu0 %618
    %v620 = vsel %vm592, %v613, 0.0
    %621 = vadd.xlane.f32.xlu0 %v620
    %v622 = vpop.xlane.xlu0 %621
    %v623 = vmax.f32 %v616, 1e-16
    %v624 = vmax.f32 %v619, 1e-16
    %v625 = vmax.f32 %v622, 1e-16
    %v626 = vrcp.pop %v623
    %v627 = vrcp.pop %v624
    %v628 = vrcp.pop %v625
    %v629 = vmul.f32 %v611, %v626
    %v630 = vmul.f32 %v612, %v627
    %v631 = vmul.f32 %v613, %v628
    %v632 = vpack.c.bf16 %v630, %v629
    %v633 = vpack.c.bf16 %v631, %v631
    %v635 = vsel %vm592, %v632, 0
    %v638 = vsel %vm592, %v633, 0
    %v640 = vsel %vm76, %v505, 0
    %642 = vmatprep.subr.bf16.mxu0 0
    %643 = vmatpush1.bf16.msra.mxu0 %v504
    %644 = vmatprep.subr.bf16.mxu0 0
    %645 = vmatpush1.bf16.msra.mxu0 %v640
    %646 = vmatprep.subr.bf16.mxu0 0
    %647 = vmatpush1.bf16.msra.mxu0 0
    %648 = vmatprep.subr.bf16.mxu0 0
    %649 = vmatpush1.bf16.msra.mxu0 0
    %650 = vmatprep.subr.bf16.mxu0 0
    %651 = vmatpush1.bf16.msra.mxu0 0
    %652 = vmatprep.subr.bf16.mxu0 0
    %653 = vmatpush1.bf16.msra.mxu0 0
    %654 = vmatprep.subr.bf16.mxu0 0
    %655 = vmatpush1.bf16.msra.mxu0 0
    %656 = vmatprep.subr.bf16.mxu0 0
    %657 = vmatpush1.bf16.msra.mxu0 0
    %658 = vmatprep.subr.bf16.mxu0 0
    %659 = vmatpush1.bf16.msra.mxu0 0
    %660 = vmatprep.subr.bf16.mxu0 0
    %661 = vmatpush1.bf16.msra.mxu0 0
    %662 = vmatprep.subr.bf16.mxu0 0
    %663 = vmatpush1.bf16.msra.mxu0 0
    %664 = vmatprep.subr.bf16.mxu0 0
    %665 = vmatpush1.bf16.msra.mxu0 0
    %666 = vmatprep.subr.bf16.mxu0 0
    %667 = vmatpush1.bf16.msra.mxu0 0
    %668 = vmatprep.subr.bf16.mxu0 0
    %669 = vmatpush1.bf16.msra.mxu0 0
    %670 = vmatprep.subr.bf16.mxu0 0
    %671 = vmatpush1.bf16.msra.mxu0 0
    %672 = vmatprep.subr.bf16.mxu0 0
    %673 = vmatpush1.bf16.msra.mxu0 0
    %674 = vmatprep.mubr.bf16.mxu0 0
    %675 = vmatmul.mubr.bf16.gmra.mrb[0].mxu0 %v635
    %v676 = vpop.f32.mrb[0].mxu0
    %v677 = vadd.f32 0.0, %v676
    %v678 = vpop.f32.mrb[0].mxu0
    %v679 = vpop.f32.mrb[0].mxu0
    %v680 = vadd.f32 0.0, %v679
    %v681 = vpop.f32.mrb[0].mxu0
    %682 = vmatprep.mubr.bf16.mxu0 0
    %683 = vmatmul.mubr.bf16.gmra.mrb[0].mxu0 %v638
    %v684 = vpop.f32.mrb[0].mxu0
    %v685 = vadd.f32 0.0, %v684
    %v686 = vpop.f32.mrb[0].mxu0
    %v687 = vpop.f32.mrb[0].mxu0
    %v688 = vpop.f32.mrb[0].mxu0
    %689 = vdwg.mxu0
    %vm690 = vcmp.ge.s32.totalorder %v496, 0
    %vm691 = vcmp.lt.s32.totalorder %v496, 16
    %vm692 = vmand %vm690, %vm691
    %v693 = vsel %vm692, 1, 0
    %vm694 = vcmp.eq.s32.totalorder %v693, 1
    %v695 = vsel %vm694, %v677, 0.0
    %v696 = vsel %vm694, %v680, 0.0
    %v697 = vsel %vm694, %v685, 0.0
    %698 = vset.pattern.permute.xlu0 1
    %699 = vperm.xlu0 %698, %v408
    %v700 = vpop.permute.xlu0 %699
    %702 = vset.pattern.permute.xlu0 1
    %703 = vperm.xlu0 %702, %v411
    %v704 = vpop.permute.xlu0 %703
    %706 = vset.pattern.permute.xlu0 1
    %707 = vperm.xlu0 %706, %v416
    %v708 = vpop.permute.xlu0 %707
    %v710 = vlaneseq
    %v711 = vshrl.u32 %v710, 7
    %v712 = vsub.s32 1, %v711
    %v713 = vrot.slane %v550, %v712
    %v714 = vadd.f32 %v700, %v713
    %v715 = vadd.f32 %v704, %v713
    %v716 = vadd.f32 %v708, %v713
    %vm717 = vcmp.gt.f32.partialorder %v714, 0.0
    %vm718 = vcmp.gt.f32.partialorder %v715, 0.0
    %vm719 = vcmp.gt.f32.partialorder %v716, 0.0
    %v720 = vmul.f32 %v714, 0.2
    %v721 = vmul.f32 %v715, 0.2
    %v722 = vmul.f32 %v716, 0.2
    %v723 = vsel %vm717, %v714, %v720
    %v724 = vsel %vm718, %v715, %v721
    %v725 = vsel %vm719, %v716, %v722
    %v726 = vsel %vm586, %v723, -1e+30
    %v727 = vsel %vm587, %v724, -1e+30
    %v728 = vsel %vm588, %v725, -1e+30
    %v729 = vsel %vm592, %v726, -inf
    %730 = vmax.xlane.f32.xlu0 %v729
    %v731 = vpop.xlane.xlu0 %730
    %v732 = vsel %vm592, %v727, -inf
    %733 = vmax.xlane.f32.xlu0 %v732
    %v734 = vpop.xlane.xlu0 %733
    %v735 = vsel %vm592, %v728, -inf
    %736 = vmax.xlane.f32.xlu0 %v735
    %v737 = vpop.xlane.xlu0 %736
    %v738 = vsub.f32 %v726, %v731
    %v739 = vsub.f32 %v727, %v734
    %v740 = vsub.f32 %v728, %v737
    %v741 = vmul.f32 %v738, 1.442695
    %v742 = vpow.pop %v741
    %v743 = vmul.f32 %v739, 1.442695
    %v744 = vpow.pop %v743
    %v745 = vmul.f32 %v740, 1.442695
    %v746 = vpow.pop %v745
    %v747 = vsel %vm586, %v742, 0.0
    %v748 = vsel %vm587, %v744, 0.0
    %v749 = vsel %vm588, %v746, 0.0
    %v750 = vsel %vm592, %v747, 0.0
    %751 = vadd.xlane.f32.xlu0 %v750
    %v752 = vpop.xlane.xlu0 %751
    %v753 = vsel %vm592, %v748, 0.0
    %754 = vadd.xlane.f32.xlu0 %v753
    %v755 = vpop.xlane.xlu0 %754
    %v756 = vsel %vm592, %v749, 0.0
    %757 = vadd.xlane.f32.xlu0 %v756
    %v758 = vpop.xlane.xlu0 %757
    %v759 = vmax.f32 %v752, 1e-16
    %v760 = vmax.f32 %v755, 1e-16
    %v761 = vmax.f32 %v758, 1e-16
    %v762 = vrcp.pop %v759
    %v763 = vrcp.pop %v760
    %v764 = vrcp.pop %v761
    %v765 = vmul.f32 %v747, %v762
    %v766 = vmul.f32 %v748, %v763
    %v767 = vmul.f32 %v749, %v764
    %v768 = vpack.c.bf16 %v766, %v765
    %v769 = vpack.c.bf16 %v767, %v767
    %v771 = vsel %vm592, %v768, 0
    %v774 = vsel %vm592, %v769, 0
    %776 = vmatprep.subr.bf16.mxu0 0
    %777 = vmatpush1.bf16.msra.mxu0 %v504
    %778 = vmatprep.subr.bf16.mxu0 0
    %779 = vmatpush1.bf16.msra.mxu0 %v640
    %780 = vmatprep.subr.bf16.mxu0 0
    %781 = vmatpush1.bf16.msra.mxu0 0
    %782 = vmatprep.subr.bf16.mxu0 0
    %783 = vmatpush1.bf16.msra.mxu0 0
    %784 = vmatprep.subr.bf16.mxu0 0
    %785 = vmatpush1.bf16.msra.mxu0 0
    %786 = vmatprep.subr.bf16.mxu0 0
    %787 = vmatpush1.bf16.msra.mxu0 0
    %788 = vmatprep.subr.bf16.mxu0 0
    %789 = vmatpush1.bf16.msra.mxu0 0
    %790 = vmatprep.subr.bf16.mxu0 0
    %791 = vmatpush1.bf16.msra.mxu0 0
    %792 = vmatprep.subr.bf16.mxu0 0
    %793 = vmatpush1.bf16.msra.mxu0 0
    %794 = vmatprep.subr.bf16.mxu0 0
    %795 = vmatpush1.bf16.msra.mxu0 0
    %796 = vmatprep.subr.bf16.mxu0 0
    %797 = vmatpush1.bf16.msra.mxu0 0
    %798 = vmatprep.subr.bf16.mxu0 0
    %799 = vmatpush1.bf16.msra.mxu0 0
    %800 = vmatprep.subr.bf16.mxu0 0
    %801 = vmatpush1.bf16.msra.mxu0 0
    %802 = vmatprep.subr.bf16.mxu0 0
    %803 = vmatpush1.bf16.msra.mxu0 0
    %804 = vmatprep.subr.bf16.mxu0 0
    %805 = vmatpush1.bf16.msra.mxu0 0
    %806 = vmatprep.subr.bf16.mxu0 0
    %807 = vmatpush1.bf16.msra.mxu0 0
    %808 = vmatprep.mubr.bf16.mxu0 0
    %809 = vmatmul.mubr.bf16.gmra.mrb[0].mxu0 %v771
    %v810 = vpop.f32.mrb[0].mxu0
    %v811 = vadd.f32 0.0, %v810
    %v812 = vpop.f32.mrb[0].mxu0
    %v813 = vpop.f32.mrb[0].mxu0
    %v814 = vadd.f32 0.0, %v813
    %v815 = vpop.f32.mrb[0].mxu0
    %816 = vmatprep.mubr.bf16.mxu0 0
    %817 = vmatmul.mubr.bf16.gmra.mrb[0].mxu0 %v774
    %v818 = vpop.f32.mrb[0].mxu0
    %v819 = vadd.f32 0.0, %v818
    %v820 = vpop.f32.mrb[0].mxu0
    %v821 = vpop.f32.mrb[0].mxu0
    %v822 = vpop.f32.mrb[0].mxu0
    %823 = vdwg.mxu0
    %vm824 = vcmp.ge.s32.totalorder %v496, 16
    %vm825 = vcmp.lt.s32.totalorder %v496, 32
    %vm826 = vmand %vm824, %vm825
    %v827 = vsel %vm826, 1, 0
    %vm828 = vcmp.eq.s32.totalorder %v827, 1
    %v829 = vsel %vm828, %v811, %v695
    %v830 = vsel %vm828, %v814, %v696
    %v831 = vsel %vm828, %v819, %v697
    %v832 = vlaneseq
    %v833 = vshrl.u32 %v832, 7
    %v834 = vsub.s32 0, %v833
    %v835 = vrot.slane %v43, %v834
    %v836 = vadd.f32 %v829, %v835
    %v837 = vadd.f32 %v830, %v835
    %v838 = vadd.f32 %v831, %v835
    %vm839 = vcmp.ge.f32.partialorder %v836, 0.0
    %vm840 = vcmp.ge.f32.partialorder %v837, 0.0
    %vm841 = vcmp.ge.f32.partialorder %v838, 0.0
    %v842 = vlaneseq
    %v843 = vshrl.u32 %v842, 7
    %v844 = vsub.s32 0, %v843
    %v845 = vrot.slane %v42, %v844
    %v846 = vmul.f32 %v845, %v836
    %v847 = vmul.f32 %v845, %v837
    %v848 = vmul.f32 %v845, %v838
    %v849 = vsel %vm839, %v836, %v846
    %v850 = vsel %vm840, %v837, %v847
    %v851 = vsel %vm841, %v838, %v848
    %v852 = vpack.c.bf16 %v290, %v285
    %v853 = vpack.c.bf16 %v293, %v293
    %v855 = vsel %vm229, %v852, 0
    %v858 = vsel %vm229, %v853, 0
    %860 = vmatprep.subr.bf16.mxu0 0
    %861 = vmatpush1.bf16.xpose.msra.mxu0 %v855
    %862 = vmatprep.subr.bf16.mxu0 0
    %863 = vmatpush1.bf16.xpose.msra.mxu0 %v858
    %864 = vmatprep.subr.bf16.mxu0 0
    %865 = vmatpush1.bf16.xpose.msra.mxu0 0
    %866 = vmatprep.subr.bf16.mxu0 0
    %867 = vmatpush1.bf16.xpose.msra.mxu0 0
    %868 = vmatprep.subr.bf16.mxu0 0
    %869 = vmatpush1.bf16.xpose.msra.mxu0 0
    %870 = vmatprep.subr.bf16.mxu0 0
    %871 = vmatpush1.bf16.xpose.msra.mxu0 0
    %872 = vmatprep.subr.bf16.mxu0 0
    %873 = vmatpush1.bf16.xpose.msra.mxu0 0
    %874 = vmatprep.subr.bf16.mxu0 0
    %875 = vmatpush1.bf16.xpose.msra.mxu0 0
    %876 = vmatprep.subr.bf16.mxu0 0
    %877 = vmatpush1.bf16.xpose.msra.mxu0 0
    %878 = vmatprep.subr.bf16.mxu0 0
    %879 = vmatpush1.bf16.xpose.msra.mxu0 0
    %880 = vmatprep.subr.bf16.mxu0 0
    %881 = vmatpush1.bf16.xpose.msra.mxu0 0
    %882 = vmatprep.subr.bf16.mxu0 0
    %883 = vmatpush1.bf16.xpose.msra.mxu0 0
    %884 = vmatprep.subr.bf16.mxu0 0
    %885 = vmatpush1.bf16.xpose.msra.mxu0 0
    %886 = vmatprep.subr.bf16.mxu0 0
    %887 = vmatpush1.bf16.xpose.msra.mxu0 0
    %888 = vmatprep.subr.bf16.mxu0 0
    %889 = vmatpush1.bf16.xpose.msra.mxu0 0
    %890 = vmatprep.subr.bf16.mxu0 0
    %891 = vmatpush1.bf16.xpose.msra.mxu0 0
    %892 = vmatprep.mubr.bf16.mxu0 0
    %893 = vmatmul.mubr.bf16.gmra.mrb[0].mxu0 %v507
    %v894 = vpop.f32.mrb[0].mxu0
    %v895 = vadd.f32 0.0, %v894
    %v896 = vpop.f32.mrb[0].mxu0
    %v897 = vpop.f32.mrb[0].mxu0
    %v898 = vpop.f32.mrb[0].mxu0
    %899 = vdwg.mxu0
    %901 = vset.pattern.permute.xlu0 0
    %902 = vperm.xlu0 %901, %v419
    %v903 = vpop.permute.xlu0 %902
    %906 = vset.pattern.permute.xlu0 0
    %907 = vperm.xlu0 %906, %v424
    %v908 = vpop.permute.xlu0 %907
    %911 = vset.pattern.permute.xlu0 0
    %912 = vperm.xlu0 %911, %v427
    %v913 = vpop.permute.xlu0 %912
    %v915 = vlaneseq
    %v916 = vshrl.u32 %v915, 7
    %v917 = vsub.s32 0, %v916
    %v918 = vrot.slane %v895, %v917
    %v919 = vadd.f32 %v903, %v918
    %v920 = vadd.f32 %v908, %v918
    %v921 = vadd.f32 %v913, %v918
    %vm922 = vcmp.gt.f32.partialorder %v919, 0.0
    %vm923 = vcmp.gt.f32.partialorder %v920, 0.0
    %vm924 = vcmp.gt.f32.partialorder %v921, 0.0
    %v925 = vmul.f32 %v919, 0.2
    %v926 = vmul.f32 %v920, 0.2
    %v927 = vmul.f32 %v921, 0.2
    %v928 = vsel %vm922, %v919, %v925
    %v929 = vsel %vm923, %v920, %v926
    %v930 = vsel %vm924, %v921, %v927
    %v931 = vsel %vm586, %v928, -1e+30
    %v932 = vsel %vm587, %v929, -1e+30
    %v933 = vsel %vm588, %v930, -1e+30
    %v934 = vsel %vm592, %v931, -inf
    %935 = vmax.xlane.f32.xlu0 %v934
    %v936 = vpop.xlane.xlu0 %935
    %v937 = vsel %vm592, %v932, -inf
    %938 = vmax.xlane.f32.xlu0 %v937
    %v939 = vpop.xlane.xlu0 %938
    %v940 = vsel %vm592, %v933, -inf
    %941 = vmax.xlane.f32.xlu0 %v940
    %v942 = vpop.xlane.xlu0 %941
    %v943 = vsub.f32 %v931, %v936
    %v944 = vsub.f32 %v932, %v939
    %v945 = vsub.f32 %v933, %v942
    %v946 = vmul.f32 %v943, 1.442695
    %v947 = vpow.pop %v946
    %v948 = vmul.f32 %v944, 1.442695
    %v949 = vpow.pop %v948
    %v950 = vmul.f32 %v945, 1.442695
    %v951 = vpow.pop %v950
    %v952 = vsel %vm586, %v947, 0.0
    %v953 = vsel %vm587, %v949, 0.0
    %v954 = vsel %vm588, %v951, 0.0
    %v955 = vsel %vm592, %v952, 0.0
    %956 = vadd.xlane.f32.xlu0 %v955
    %v957 = vpop.xlane.xlu0 %956
    %v958 = vsel %vm592, %v953, 0.0
    %959 = vadd.xlane.f32.xlu0 %v958
    %v960 = vpop.xlane.xlu0 %959
    %v961 = vsel %vm592, %v954, 0.0
    %962 = vadd.xlane.f32.xlu0 %v961
    %v963 = vpop.xlane.xlu0 %962
    %v964 = vmax.f32 %v957, 1e-16
    %v965 = vmax.f32 %v960, 1e-16
    %v966 = vmax.f32 %v963, 1e-16
    %v967 = vrcp.pop %v964
    %v968 = vrcp.pop %v965
    %v969 = vrcp.pop %v966
    %v970 = vmul.f32 %v952, %v967
    %v971 = vmul.f32 %v953, %v968
    %v972 = vmul.f32 %v954, %v969
    %v973 = vpack.c.bf16 %v971, %v970
    %v974 = vpack.c.bf16 %v972, %v972
    %v976 = vsel %vm592, %v973, 0
    %v979 = vsel %vm592, %v974, 0
    %v981 = vsel %vm76, %v853, 0
    %983 = vmatprep.subr.bf16.mxu0 0
    %984 = vmatpush1.bf16.msra.mxu0 %v852
    %985 = vmatprep.subr.bf16.mxu0 0
    %986 = vmatpush1.bf16.msra.mxu0 %v981
    %987 = vmatprep.subr.bf16.mxu0 0
    %988 = vmatpush1.bf16.msra.mxu0 0
    %989 = vmatprep.subr.bf16.mxu0 0
    %990 = vmatpush1.bf16.msra.mxu0 0
    %991 = vmatprep.subr.bf16.mxu0 0
    %992 = vmatpush1.bf16.msra.mxu0 0
    %993 = vmatprep.subr.bf16.mxu0 0
    %994 = vmatpush1.bf16.msra.mxu0 0
    %995 = vmatprep.subr.bf16.mxu0 0
    %996 = vmatpush1.bf16.msra.mxu0 0
    %997 = vmatprep.subr.bf16.mxu0 0
    %998 = vmatpush1.bf16.msra.mxu0 0
    %999 = vmatprep.subr.bf16.mxu0 0
    %1000 = vmatpush1.bf16.msra.mxu0 0
    %1001 = vmatprep.subr.bf16.mxu0 0
    %1002 = vmatpush1.bf16.msra.mxu0 0
    %1003 = vmatprep.subr.bf16.mxu0 0
    %1004 = vmatpush1.bf16.msra.mxu0 0
    %1005 = vmatprep.subr.bf16.mxu0 0
    %1006 = vmatpush1.bf16.msra.mxu0 0
    %1007 = vmatprep.subr.bf16.mxu0 0
    %1008 = vmatpush1.bf16.msra.mxu0 0
    %1009 = vmatprep.subr.bf16.mxu0 0
    %1010 = vmatpush1.bf16.msra.mxu0 0
    %1011 = vmatprep.subr.bf16.mxu0 0
    %1012 = vmatpush1.bf16.msra.mxu0 0
    %1013 = vmatprep.subr.bf16.mxu0 0
    %1014 = vmatpush1.bf16.msra.mxu0 0
    %1015 = vmatprep.mubr.bf16.mxu0 0
    %1016 = vmatmul.mubr.bf16.gmra.mrb[0].mxu0 %v976
    %v1017 = vpop.f32.mrb[0].mxu0
    %v1018 = vadd.f32 0.0, %v1017
    %v1019 = vpop.f32.mrb[0].mxu0
    %v1020 = vpop.f32.mrb[0].mxu0
    %v1021 = vadd.f32 0.0, %v1020
    %v1022 = vpop.f32.mrb[0].mxu0
    %1023 = vmatprep.mubr.bf16.mxu0 0
    %1024 = vmatmul.mubr.bf16.gmra.mrb[0].mxu0 %v979
    %v1025 = vpop.f32.mrb[0].mxu0
    %v1026 = vadd.f32 0.0, %v1025
    %v1027 = vpop.f32.mrb[0].mxu0
    %v1028 = vpop.f32.mrb[0].mxu0
    %v1029 = vpop.f32.mrb[0].mxu0
    %1030 = vdwg.mxu0
    %v1031 = vsel %vm694, %v1018, 0.0
    %v1032 = vsel %vm694, %v1021, 0.0
    %v1033 = vsel %vm694, %v1026, 0.0
    %1034 = vset.pattern.permute.xlu0 1
    %1035 = vperm.xlu0 %1034, %v419
    %v1036 = vpop.permute.xlu0 %1035
    %1038 = vset.pattern.permute.xlu0 1
    %1039 = vperm.xlu0 %1038, %v424
    %v1040 = vpop.permute.xlu0 %1039
    %1042 = vset.pattern.permute.xlu0 1
    %1043 = vperm.xlu0 %1042, %v427
    %v1044 = vpop.permute.xlu0 %1043
    %v1046 = vlaneseq
    %v1047 = vshrl.u32 %v1046, 7
    %v1048 = vsub.s32 1, %v1047
    %v1049 = vrot.slane %v895, %v1048
    %v1050 = vadd.f32 %v1036, %v1049
    %v1051 = vadd.f32 %v1040, %v1049
    %v1052 = vadd.f32 %v1044, %v1049
    %vm1053 = vcmp.gt.f32.partialorder %v1050, 0.0
    %vm1054 = vcmp.gt.f32.partialorder %v1051, 0.0
    %vm1055 = vcmp.gt.f32.partialorder %v1052, 0.0
    %v1056 = vmul.f32 %v1050, 0.2
    %v1057 = vmul.f32 %v1051, 0.2
    %v1058 = vmul.f32 %v1052, 0.2
    %v1059 = vsel %vm1053, %v1050, %v1056
    %v1060 = vsel %vm1054, %v1051, %v1057
    %v1061 = vsel %vm1055, %v1052, %v1058
    %v1062 = vsel %vm586, %v1059, -1e+30
    %v1063 = vsel %vm587, %v1060, -1e+30
    %v1064 = vsel %vm588, %v1061, -1e+30
    %v1065 = vsel %vm592, %v1062, -inf
    %1066 = vmax.xlane.f32.xlu0 %v1065
    %v1067 = vpop.xlane.xlu0 %1066
    %v1068 = vsel %vm592, %v1063, -inf
    %1069 = vmax.xlane.f32.xlu0 %v1068
    %v1070 = vpop.xlane.xlu0 %1069
    %v1071 = vsel %vm592, %v1064, -inf
    %1072 = vmax.xlane.f32.xlu0 %v1071
    %v1073 = vpop.xlane.xlu0 %1072
    %v1074 = vsub.f32 %v1062, %v1067
    %v1075 = vsub.f32 %v1063, %v1070
    %v1076 = vsub.f32 %v1064, %v1073
    %v1077 = vmul.f32 %v1074, 1.442695
    %v1078 = vpow.pop %v1077
    %v1079 = vmul.f32 %v1075, 1.442695
    %v1080 = vpow.pop %v1079
    %v1081 = vmul.f32 %v1076, 1.442695
    %v1082 = vpow.pop %v1081
    %v1083 = vsel %vm586, %v1078, 0.0
    %v1084 = vsel %vm587, %v1080, 0.0
    %v1085 = vsel %vm588, %v1082, 0.0
    %v1086 = vsel %vm592, %v1083, 0.0
    %1087 = vadd.xlane.f32.xlu0 %v1086
    %v1088 = vpop.xlane.xlu0 %1087
    %v1089 = vsel %vm592, %v1084, 0.0
    %1090 = vadd.xlane.f32.xlu0 %v1089
    %v1091 = vpop.xlane.xlu0 %1090
    %v1092 = vsel %vm592, %v1085, 0.0
    %1093 = vadd.xlane.f32.xlu0 %v1092
    %v1094 = vpop.xlane.xlu0 %1093
    %v1095 = vmax.f32 %v1088, 1e-16
    %v1096 = vmax.f32 %v1091, 1e-16
    %v1097 = vmax.f32 %v1094, 1e-16
    %v1098 = vrcp.pop %v1095
    %v1099 = vrcp.pop %v1096
    %v1100 = vrcp.pop %v1097
    %v1101 = vmul.f32 %v1083, %v1098
    %v1102 = vmul.f32 %v1084, %v1099
    %v1103 = vmul.f32 %v1085, %v1100
    %v1104 = vpack.c.bf16 %v1102, %v1101
    %v1105 = vpack.c.bf16 %v1103, %v1103
    %v1107 = vsel %vm592, %v1104, 0
    %v1110 = vsel %vm592, %v1105, 0
    %1112 = vmatprep.subr.bf16.mxu0 0
    %1113 = vmatpush1.bf16.msra.mxu0 %v852
    %1114 = vmatprep.subr.bf16.mxu0 0
    %1115 = vmatpush1.bf16.msra.mxu0 %v981
    %1116 = vmatprep.subr.bf16.mxu0 0
    %1117 = vmatpush1.bf16.msra.mxu0 0
    %1118 = vmatprep.subr.bf16.mxu0 0
    %1119 = vmatpush1.bf16.msra.mxu0 0
    %1120 = vmatprep.subr.bf16.mxu0 0
    %1121 = vmatpush1.bf16.msra.mxu0 0
    %1122 = vmatprep.subr.bf16.mxu0 0
    %1123 = vmatpush1.bf16.msra.mxu0 0
    %1124 = vmatprep.subr.bf16.mxu0 0
    %1125 = vmatpush1.bf16.msra.mxu0 0
    %1126 = vmatprep.subr.bf16.mxu0 0
    %1127 = vmatpush1.bf16.msra.mxu0 0
    %1128 = vmatprep.subr.bf16.mxu0 0
    %1129 = vmatpush1.bf16.msra.mxu0 0
    %1130 = vmatprep.subr.bf16.mxu0 0
    %1131 = vmatpush1.bf16.msra.mxu0 0
    %1132 = vmatprep.subr.bf16.mxu0 0
    %1133 = vmatpush1.bf16.msra.mxu0 0
    %1134 = vmatprep.subr.bf16.mxu0 0
    %1135 = vmatpush1.bf16.msra.mxu0 0
    %1136 = vmatprep.subr.bf16.mxu0 0
    %1137 = vmatpush1.bf16.msra.mxu0 0
    %1138 = vmatprep.subr.bf16.mxu0 0
    %1139 = vmatpush1.bf16.msra.mxu0 0
    %1140 = vmatprep.subr.bf16.mxu0 0
    %1141 = vmatpush1.bf16.msra.mxu0 0
    %1142 = vmatprep.subr.bf16.mxu0 0
    %1143 = vmatpush1.bf16.msra.mxu0 0
    %1144 = vmatprep.mubr.bf16.mxu0 0
    %1145 = vmatmul.mubr.bf16.gmra.mrb[0].mxu0 %v1107
    %v1146 = vpop.f32.mrb[0].mxu0
    %v1147 = vadd.f32 0.0, %v1146
    %v1148 = vpop.f32.mrb[0].mxu0
    %v1149 = vpop.f32.mrb[0].mxu0
    %v1150 = vadd.f32 0.0, %v1149
    %v1151 = vpop.f32.mrb[0].mxu0
    %1152 = vmatprep.mubr.bf16.mxu0 0
    %1153 = vmatmul.mubr.bf16.gmra.mrb[0].mxu0 %v1110
    %v1154 = vpop.f32.mrb[0].mxu0
    %v1155 = vadd.f32 0.0, %v1154
    %v1156 = vpop.f32.mrb[0].mxu0
    %v1157 = vpop.f32.mrb[0].mxu0
    %v1158 = vpop.f32.mrb[0].mxu0
    %1159 = vdwg.mxu0
    %v1160 = vsel %vm828, %v1147, %v1031
    %v1161 = vsel %vm828, %v1150, %v1032
    %v1162 = vsel %vm828, %v1155, %v1033
    %v1163 = vadd.f32 %v1160, %v835
    %v1164 = vadd.f32 %v1161, %v835
    %v1165 = vadd.f32 %v1162, %v835
    %vm1166 = vcmp.ge.f32.partialorder %v1163, 0.0
    %vm1167 = vcmp.ge.f32.partialorder %v1164, 0.0
    %vm1168 = vcmp.ge.f32.partialorder %v1165, 0.0
    %v1169 = vmul.f32 %v845, %v1163
    %v1170 = vmul.f32 %v845, %v1164
    %v1171 = vmul.f32 %v845, %v1165
    %v1172 = vsel %vm1166, %v1163, %v1169
    %v1173 = vsel %vm1167, %v1164, %v1170
    %v1174 = vsel %vm1168, %v1165, %v1171
    %v1175 = vpack.c.bf16 %v46, %v46
    %v1176 = vpack.c.bf16 %v352, %v349
    %v1177 = vpack.c.bf16 %v357, %v357
    %v1179 = vsel %vm229, %v1175, 0
    %v1182 = vsel %vm229, %v1176, 0
    %v1185 = vsel %vm229, %v1177, 0
    %1187 = vmatprep.subr.bf16.mxu0 0
    %1188 = vmatpush1.bf16.xpose.msra.mxu0 %v1182
    %1189 = vmatprep.subr.bf16.mxu0 0
    %1190 = vmatpush1.bf16.xpose.msra.mxu0 %v1185
    %1191 = vmatprep.subr.bf16.mxu0 0
    %1192 = vmatpush1.bf16.xpose.msra.mxu0 0
    %1193 = vmatprep.subr.bf16.mxu0 0
    %1194 = vmatpush1.bf16.xpose.msra.mxu0 0
    %1195 = vmatprep.subr.bf16.mxu0 0
    %1196 = vmatpush1.bf16.xpose.msra.mxu0 0
    %1197 = vmatprep.subr.bf16.mxu0 0
    %1198 = vmatpush1.bf16.xpose.msra.mxu0 0
    %1199 = vmatprep.subr.bf16.mxu0 0
    %1200 = vmatpush1.bf16.xpose.msra.mxu0 0
    %1201 = vmatprep.subr.bf16.mxu0 0
    %1202 = vmatpush1.bf16.xpose.msra.mxu0 0
    %1203 = vmatprep.subr.bf16.mxu0 0
    %1204 = vmatpush1.bf16.xpose.msra.mxu0 0
    %1205 = vmatprep.subr.bf16.mxu0 0
    %1206 = vmatpush1.bf16.xpose.msra.mxu0 0
    %1207 = vmatprep.subr.bf16.mxu0 0
    %1208 = vmatpush1.bf16.xpose.msra.mxu0 0
    %1209 = vmatprep.subr.bf16.mxu0 0
    %1210 = vmatpush1.bf16.xpose.msra.mxu0 0
    %1211 = vmatprep.subr.bf16.mxu0 0
    %1212 = vmatpush1.bf16.xpose.msra.mxu0 0
    %1213 = vmatprep.subr.bf16.mxu0 0
    %1214 = vmatpush1.bf16.xpose.msra.mxu0 0
    %1215 = vmatprep.subr.bf16.mxu0 0
    %1216 = vmatpush1.bf16.xpose.msra.mxu0 0
    %1217 = vmatprep.subr.bf16.mxu0 0
    %1218 = vmatpush1.bf16.xpose.msra.mxu0 0
    %1219 = vmatprep.mubr.bf16.mxu0 0
    %1220 = vmatmul.mubr.bf16.gmra.mrb[0].mxu0 %v1179
    %v1221 = vpop.f32.mrb[0].mxu0
    %v1222 = vadd.f32 0.0, %v1221
    %v1223 = vpop.f32.mrb[0].mxu0
    %v1224 = vpop.f32.mrb[0].mxu0
    %v1225 = vpop.f32.mrb[0].mxu0
    %1226 = vdwg.mxu0
    %1228 = vset.pattern.permute.xlu0 0
    %1229 = vperm.xlu0 %1228, %v473
    %v1230 = vpop.permute.xlu0 %1229
    %1233 = vset.pattern.permute.xlu0 0
    %1234 = vperm.xlu0 %1233, %v476
    %v1235 = vpop.permute.xlu0 %1234
    %1238 = vset.pattern.permute.xlu0 0
    %1239 = vperm.xlu0 %1238, %v481
    %v1240 = vpop.permute.xlu0 %1239
    %v1242 = vlaneseq
    %v1243 = vshrl.u32 %v1242, 7
    %v1244 = vsub.s32 0, %v1243
    %v1245 = vrot.slane %v1222, %v1244
    %v1246 = vadd.f32 %v1230, %v1245
    %v1247 = vadd.f32 %v1235, %v1245
    %v1248 = vadd.f32 %v1240, %v1245
    %vm1249 = vcmp.gt.f32.partialorder %v1246, 0.0
    %vm1250 = vcmp.gt.f32.partialorder %v1247, 0.0
    %vm1251 = vcmp.gt.f32.partialorder %v1248, 0.0
    %v1252 = vmul.f32 %v1246, 0.2
    %v1253 = vmul.f32 %v1247, 0.2
    %v1254 = vmul.f32 %v1248, 0.2
    %v1255 = vsel %vm1249, %v1246, %v1252
    %v1256 = vsel %vm1250, %v1247, %v1253
    %v1257 = vsel %vm1251, %v1248, %v1254
    %vm1258 = vcmp.gt.f32.partialorder %v500, 0.0
    %vm1259 = vcmp.gt.f32.partialorder %v501, 0.0
    %vm1260 = vcmp.gt.f32.partialorder %v502, 0.0
    %v1261 = vsel %vm1258, %v1255, -1e+30
    %v1262 = vsel %vm1259, %v1256, -1e+30
    %v1263 = vsel %vm1260, %v1257, -1e+30
    %v1264 = vsel %vm592, %v1261, -inf
    %1265 = vmax.xlane.f32.xlu0 %v1264
    %v1266 = vpop.xlane.xlu0 %1265
    %v1267 = vsel %vm592, %v1262, -inf
    %1268 = vmax.xlane.f32.xlu0 %v1267
    %v1269 = vpop.xlane.xlu0 %1268
    %v1270 = vsel %vm592, %v1263, -inf
    %1271 = vmax.xlane.f32.xlu0 %v1270
    %v1272 = vpop.xlane.xlu0 %1271
    %v1273 = vsub.f32 %v1261, %v1266
    %v1274 = vsub.f32 %v1262, %v1269
    %v1275 = vsub.f32 %v1263, %v1272
    %v1276 = vmul.f32 %v1273, 1.442695
    %v1277 = vpow.pop %v1276
    %v1278 = vmul.f32 %v1274, 1.442695
    %v1279 = vpow.pop %v1278
    %v1280 = vmul.f32 %v1275, 1.442695
    %v1281 = vpow.pop %v1280
    %v1282 = vsel %vm1258, %v1277, 0.0
    %v1283 = vsel %vm1259, %v1279, 0.0
    %v1284 = vsel %vm1260, %v1281, 0.0
    %v1285 = vsel %vm592, %v1282, 0.0
    %1286 = vadd.xlane.f32.xlu0 %v1285
    %v1287 = vpop.xlane.xlu0 %1286
    %v1288 = vsel %vm592, %v1283, 0.0
    %1289 = vadd.xlane.f32.xlu0 %v1288
    %v1290 = vpop.xlane.xlu0 %1289
    %v1291 = vsel %vm592, %v1284, 0.0
    %1292 = vadd.xlane.f32.xlu0 %v1291
    %v1293 = vpop.xlane.xlu0 %1292
    %v1294 = vmax.f32 %v1287, 1e-16
    %v1295 = vmax.f32 %v1290, 1e-16
    %v1296 = vmax.f32 %v1293, 1e-16
    %v1297 = vrcp.pop %v1294
    %v1298 = vrcp.pop %v1295
    %v1299 = vrcp.pop %v1296
    %v1300 = vmul.f32 %v1282, %v1297
    %v1301 = vmul.f32 %v1283, %v1298
    %v1302 = vmul.f32 %v1284, %v1299
    %v1303 = vpack.c.bf16 %v1301, %v1300
    %v1304 = vpack.c.bf16 %v1302, %v1302
    %v1306 = vsel %vm592, %v1303, 0
    %v1309 = vsel %vm592, %v1304, 0
    %v1311 = vsel %vm76, %v1177, 0
    %1313 = vmatprep.subr.bf16.mxu0 0
    %1314 = vmatpush1.bf16.msra.mxu0 %v1176
    %1315 = vmatprep.subr.bf16.mxu0 0
    %1316 = vmatpush1.bf16.msra.mxu0 %v1311
    %1317 = vmatprep.subr.bf16.mxu0 0
    %1318 = vmatpush1.bf16.msra.mxu0 0
    %1319 = vmatprep.subr.bf16.mxu0 0
    %1320 = vmatpush1.bf16.msra.mxu0 0
    %1321 = vmatprep.subr.bf16.mxu0 0
    %1322 = vmatpush1.bf16.msra.mxu0 0
    %1323 = vmatprep.subr.bf16.mxu0 0
    %1324 = vmatpush1.bf16.msra.mxu0 0
    %1325 = vmatprep.subr.bf16.mxu0 0
    %1326 = vmatpush1.bf16.msra.mxu0 0
    %1327 = vmatprep.subr.bf16.mxu0 0
    %1328 = vmatpush1.bf16.msra.mxu0 0
    %1329 = vmatprep.subr.bf16.mxu0 0
    %1330 = vmatpush1.bf16.msra.mxu0 0
    %1331 = vmatprep.subr.bf16.mxu0 0
    %1332 = vmatpush1.bf16.msra.mxu0 0
    %1333 = vmatprep.subr.bf16.mxu0 0
    %1334 = vmatpush1.bf16.msra.mxu0 0
    %1335 = vmatprep.subr.bf16.mxu0 0
    %1336 = vmatpush1.bf16.msra.mxu0 0
    %1337 = vmatprep.subr.bf16.mxu0 0
    %1338 = vmatpush1.bf16.msra.mxu0 0
    %1339 = vmatprep.subr.bf16.mxu0 0
    %1340 = vmatpush1.bf16.msra.mxu0 0
    %1341 = vmatprep.subr.bf16.mxu0 0
    %1342 = vmatpush1.bf16.msra.mxu0 0
    %1343 = vmatprep.subr.bf16.mxu0 0
    %1344 = vmatpush1.bf16.msra.mxu0 0
    %1345 = vmatprep.mubr.bf16.mxu0 0
    %1346 = vmatmul.mubr.bf16.gmra.mrb[0].mxu0 %v1306
    %v1347 = vpop.f32.mrb[0].mxu0
    %v1348 = vadd.f32 0.0, %v1347
    %v1349 = vpop.f32.mrb[0].mxu0
    %v1350 = vpop.f32.mrb[0].mxu0
    %v1351 = vadd.f32 0.0, %v1350
    %v1352 = vpop.f32.mrb[0].mxu0
    %1353 = vmatprep.mubr.bf16.mxu0 0
    %1354 = vmatmul.mubr.bf16.gmra.mrb[0].mxu0 %v1309
    %v1355 = vpop.f32.mrb[0].mxu0
    %v1356 = vadd.f32 0.0, %v1355
    %v1357 = vpop.f32.mrb[0].mxu0
    %v1358 = vpop.f32.mrb[0].mxu0
    %v1359 = vpop.f32.mrb[0].mxu0
    %1360 = vdwg.mxu0
    %v1361 = vsel %vm694, %v1348, 0.0
    %v1362 = vsel %vm694, %v1351, 0.0
    %v1363 = vsel %vm694, %v1356, 0.0
    %1364 = vset.pattern.permute.xlu0 1
    %1365 = vperm.xlu0 %1364, %v473
    %v1366 = vpop.permute.xlu0 %1365
    %1368 = vset.pattern.permute.xlu0 1
    %1369 = vperm.xlu0 %1368, %v476
    %v1370 = vpop.permute.xlu0 %1369
    %1372 = vset.pattern.permute.xlu0 1
    %1373 = vperm.xlu0 %1372, %v481
    %v1374 = vpop.permute.xlu0 %1373
    %v1376 = vlaneseq
    %v1377 = vshrl.u32 %v1376, 7
    %v1378 = vsub.s32 1, %v1377
    %v1379 = vrot.slane %v1222, %v1378
    %v1380 = vadd.f32 %v1366, %v1379
    %v1381 = vadd.f32 %v1370, %v1379
    %v1382 = vadd.f32 %v1374, %v1379
    %vm1383 = vcmp.gt.f32.partialorder %v1380, 0.0
    %vm1384 = vcmp.gt.f32.partialorder %v1381, 0.0
    %vm1385 = vcmp.gt.f32.partialorder %v1382, 0.0
    %v1386 = vmul.f32 %v1380, 0.2
    %v1387 = vmul.f32 %v1381, 0.2
    %v1388 = vmul.f32 %v1382, 0.2
    %v1389 = vsel %vm1383, %v1380, %v1386
    %v1390 = vsel %vm1384, %v1381, %v1387
    %v1391 = vsel %vm1385, %v1382, %v1388
    %v1392 = vsel %vm1258, %v1389, -1e+30
    %v1393 = vsel %vm1259, %v1390, -1e+30
    %v1394 = vsel %vm1260, %v1391, -1e+30
    %v1395 = vsel %vm592, %v1392, -inf
    %1396 = vmax.xlane.f32.xlu0 %v1395
    %v1397 = vpop.xlane.xlu0 %1396
    %v1398 = vsel %vm592, %v1393, -inf
    %1399 = vmax.xlane.f32.xlu0 %v1398
    %v1400 = vpop.xlane.xlu0 %1399
    %v1401 = vsel %vm592, %v1394, -inf
    %1402 = vmax.xlane.f32.xlu0 %v1401
    %v1403 = vpop.xlane.xlu0 %1402
    %v1404 = vsub.f32 %v1392, %v1397
    %v1405 = vsub.f32 %v1393, %v1400
    %v1406 = vsub.f32 %v1394, %v1403
    %v1407 = vmul.f32 %v1404, 1.442695
    %v1408 = vpow.pop %v1407
    %v1409 = vmul.f32 %v1405, 1.442695
    %v1410 = vpow.pop %v1409
    %v1411 = vmul.f32 %v1406, 1.442695
    %v1412 = vpow.pop %v1411
    %v1413 = vsel %vm1258, %v1408, 0.0
    %v1414 = vsel %vm1259, %v1410, 0.0
    %v1415 = vsel %vm1260, %v1412, 0.0
    %v1416 = vsel %vm592, %v1413, 0.0
    %1417 = vadd.xlane.f32.xlu0 %v1416
    %v1418 = vpop.xlane.xlu0 %1417
    %v1419 = vsel %vm592, %v1414, 0.0
    %1420 = vadd.xlane.f32.xlu0 %v1419
    %v1421 = vpop.xlane.xlu0 %1420
    %v1422 = vsel %vm592, %v1415, 0.0
    %1423 = vadd.xlane.f32.xlu0 %v1422
    %v1424 = vpop.xlane.xlu0 %1423
    %v1425 = vmax.f32 %v1418, 1e-16
    %v1426 = vmax.f32 %v1421, 1e-16
    %v1427 = vmax.f32 %v1424, 1e-16
    %v1428 = vrcp.pop %v1425
    %v1429 = vrcp.pop %v1426
    %v1430 = vrcp.pop %v1427
    %v1431 = vmul.f32 %v1413, %v1428
    %v1432 = vmul.f32 %v1414, %v1429
    %v1433 = vmul.f32 %v1415, %v1430
    %v1434 = vpack.c.bf16 %v1432, %v1431
    %v1435 = vpack.c.bf16 %v1433, %v1433
    %v1437 = vsel %vm592, %v1434, 0
    %v1440 = vsel %vm592, %v1435, 0
    %1442 = vmatprep.subr.bf16.mxu0 0
    %1443 = vmatpush1.bf16.msra.mxu0 %v1176
    %1444 = vmatprep.subr.bf16.mxu0 0
    %1445 = vmatpush1.bf16.msra.mxu0 %v1311
    %1446 = vmatprep.subr.bf16.mxu0 0
    %1447 = vmatpush1.bf16.msra.mxu0 0
    %1448 = vmatprep.subr.bf16.mxu0 0
    %1449 = vmatpush1.bf16.msra.mxu0 0
    %1450 = vmatprep.subr.bf16.mxu0 0
    %1451 = vmatpush1.bf16.msra.mxu0 0
    %1452 = vmatprep.subr.bf16.mxu0 0
    %1453 = vmatpush1.bf16.msra.mxu0 0
    %1454 = vmatprep.subr.bf16.mxu0 0
    %1455 = vmatpush1.bf16.msra.mxu0 0
    %1456 = vmatprep.subr.bf16.mxu0 0
    %1457 = vmatpush1.bf16.msra.mxu0 0
    %1458 = vmatprep.subr.bf16.mxu0 0
    %1459 = vmatpush1.bf16.msra.mxu0 0
    %1460 = vmatprep.subr.bf16.mxu0 0
    %1461 = vmatpush1.bf16.msra.mxu0 0
    %1462 = vmatprep.subr.bf16.mxu0 0
    %1463 = vmatpush1.bf16.msra.mxu0 0
    %1464 = vmatprep.subr.bf16.mxu0 0
    %1465 = vmatpush1.bf16.msra.mxu0 0
    %1466 = vmatprep.subr.bf16.mxu0 0
    %1467 = vmatpush1.bf16.msra.mxu0 0
    %1468 = vmatprep.subr.bf16.mxu0 0
    %1469 = vmatpush1.bf16.msra.mxu0 0
    %1470 = vmatprep.subr.bf16.mxu0 0
    %1471 = vmatpush1.bf16.msra.mxu0 0
    %1472 = vmatprep.subr.bf16.mxu0 0
    %1473 = vmatpush1.bf16.msra.mxu0 0
    %1474 = vmatprep.mubr.bf16.mxu0 0
    %1475 = vmatmul.mubr.bf16.gmra.mrb[0].mxu0 %v1437
    %v1476 = vpop.f32.mrb[0].mxu0
    %v1477 = vadd.f32 0.0, %v1476
    %v1478 = vpop.f32.mrb[0].mxu0
    %v1479 = vpop.f32.mrb[0].mxu0
    %v1480 = vadd.f32 0.0, %v1479
    %v1481 = vpop.f32.mrb[0].mxu0
    %1482 = vmatprep.mubr.bf16.mxu0 0
    %1483 = vmatmul.mubr.bf16.gmra.mrb[0].mxu0 %v1440
    %v1484 = vpop.f32.mrb[0].mxu0
    %v1485 = vadd.f32 0.0, %v1484
    %v1486 = vpop.f32.mrb[0].mxu0
    %v1487 = vpop.f32.mrb[0].mxu0
    %v1488 = vpop.f32.mrb[0].mxu0
    %1489 = vdwg.mxu0
    %v1490 = vsel %vm828, %v1477, %v1361
    %v1491 = vsel %vm828, %v1480, %v1362
    %v1492 = vsel %vm828, %v1485, %v1363
    %v1493 = vlaneseq
    %v1494 = vshrl.u32 %v1493, 7
    %v1495 = vsub.s32 0, %v1494
    %v1496 = vrot.slane %v44, %v1495
    %v1497 = vadd.f32 %v1490, %v1496
    %v1498 = vadd.f32 %v1491, %v1496
    %v1499 = vadd.f32 %v1492, %v1496
    %vm1500 = vcmp.ge.f32.partialorder %v1497, 0.0
    %vm1501 = vcmp.ge.f32.partialorder %v1498, 0.0
    %vm1502 = vcmp.ge.f32.partialorder %v1499, 0.0
    %v1503 = vlaneseq
    %v1504 = vshrl.u32 %v1503, 7
    %v1505 = vsub.s32 0, %v1504
    %v1506 = vrot.slane %v41, %v1505
    %v1507 = vmul.f32 %v1506, %v1497
    %v1508 = vmul.f32 %v1506, %v1498
    %v1509 = vmul.f32 %v1506, %v1499
    %v1510 = vsel %vm1500, %v1497, %v1507
    %v1511 = vsel %vm1501, %v1498, %v1508
    %v1512 = vsel %vm1502, %v1499, %v1509
    %v1513 = vpack.c.bf16 %v365, %v360
    %v1514 = vpack.c.bf16 %v368, %v368
    %v1516 = vsel %vm229, %v1513, 0
    %v1519 = vsel %vm229, %v1514, 0
    %1521 = vmatprep.subr.bf16.mxu0 0
    %1522 = vmatpush1.bf16.xpose.msra.mxu0 %v1516
    %1523 = vmatprep.subr.bf16.mxu0 0
    %1524 = vmatpush1.bf16.xpose.msra.mxu0 %v1519
    %1525 = vmatprep.subr.bf16.mxu0 0
    %1526 = vmatpush1.bf16.xpose.msra.mxu0 0
    %1527 = vmatprep.subr.bf16.mxu0 0
    %1528 = vmatpush1.bf16.xpose.msra.mxu0 0
    %1529 = vmatprep.subr.bf16.mxu0 0
    %1530 = vmatpush1.bf16.xpose.msra.mxu0 0
    %1531 = vmatprep.subr.bf16.mxu0 0
    %1532 = vmatpush1.bf16.xpose.msra.mxu0 0
    %1533 = vmatprep.subr.bf16.mxu0 0
    %1534 = vmatpush1.bf16.xpose.msra.mxu0 0
    %1535 = vmatprep.subr.bf16.mxu0 0
    %1536 = vmatpush1.bf16.xpose.msra.mxu0 0
    %1537 = vmatprep.subr.bf16.mxu0 0
    %1538 = vmatpush1.bf16.xpose.msra.mxu0 0
    %1539 = vmatprep.subr.bf16.mxu0 0
    %1540 = vmatpush1.bf16.xpose.msra.mxu0 0
    %1541 = vmatprep.subr.bf16.mxu0 0
    %1542 = vmatpush1.bf16.xpose.msra.mxu0 0
    %1543 = vmatprep.subr.bf16.mxu0 0
    %1544 = vmatpush1.bf16.xpose.msra.mxu0 0
    %1545 = vmatprep.subr.bf16.mxu0 0
    %1546 = vmatpush1.bf16.xpose.msra.mxu0 0
    %1547 = vmatprep.subr.bf16.mxu0 0
    %1548 = vmatpush1.bf16.xpose.msra.mxu0 0
    %1549 = vmatprep.subr.bf16.mxu0 0
    %1550 = vmatpush1.bf16.xpose.msra.mxu0 0
    %1551 = vmatprep.subr.bf16.mxu0 0
    %1552 = vmatpush1.bf16.xpose.msra.mxu0 0
    %1553 = vmatprep.mubr.bf16.mxu0 0
    %1554 = vmatmul.mubr.bf16.gmra.mrb[0].mxu0 %v1179
    %v1555 = vpop.f32.mrb[0].mxu0
    %v1556 = vadd.f32 0.0, %v1555
    %v1557 = vpop.f32.mrb[0].mxu0
    %v1558 = vpop.f32.mrb[0].mxu0
    %v1559 = vpop.f32.mrb[0].mxu0
    %1560 = vdwg.mxu0
    %1562 = vset.pattern.permute.xlu0 0
    %1563 = vperm.xlu0 %1562, %v484
    %v1564 = vpop.permute.xlu0 %1563
    %1567 = vset.pattern.permute.xlu0 0
    %1568 = vperm.xlu0 %1567, %v489
    %v1569 = vpop.permute.xlu0 %1568
    %1572 = vset.pattern.permute.xlu0 0
    %1573 = vperm.xlu0 %1572, %v492
    %v1574 = vpop.permute.xlu0 %1573
    %v1576 = vlaneseq
    %v1577 = vshrl.u32 %v1576, 7
    %v1578 = vsub.s32 0, %v1577
    %v1579 = vrot.slane %v1556, %v1578
    %v1580 = vadd.f32 %v1564, %v1579
    %v1581 = vadd.f32 %v1569, %v1579
    %v1582 = vadd.f32 %v1574, %v1579
    %vm1583 = vcmp.gt.f32.partialorder %v1580, 0.0
    %vm1584 = vcmp.gt.f32.partialorder %v1581, 0.0
    %vm1585 = vcmp.gt.f32.partialorder %v1582, 0.0
    %v1586 = vmul.f32 %v1580, 0.2
    %v1587 = vmul.f32 %v1581, 0.2
    %v1588 = vmul.f32 %v1582, 0.2
    %v1589 = vsel %vm1583, %v1580, %v1586
    %v1590 = vsel %vm1584, %v1581, %v1587
    %v1591 = vsel %vm1585, %v1582, %v1588
    %v1592 = vsel %vm1258, %v1589, -1e+30
    %v1593 = vsel %vm1259, %v1590, -1e+30
    %v1594 = vsel %vm1260, %v1591, -1e+30
    %v1595 = vsel %vm592, %v1592, -inf
    %1596 = vmax.xlane.f32.xlu0 %v1595
    %v1597 = vpop.xlane.xlu0 %1596
    %v1598 = vsel %vm592, %v1593, -inf
    %1599 = vmax.xlane.f32.xlu0 %v1598
    %v1600 = vpop.xlane.xlu0 %1599
    %v1601 = vsel %vm592, %v1594, -inf
    %1602 = vmax.xlane.f32.xlu0 %v1601
    %v1603 = vpop.xlane.xlu0 %1602
    %v1604 = vsub.f32 %v1592, %v1597
    %v1605 = vsub.f32 %v1593, %v1600
    %v1606 = vsub.f32 %v1594, %v1603
    %v1607 = vmul.f32 %v1604, 1.442695
    %v1608 = vpow.pop %v1607
    %v1609 = vmul.f32 %v1605, 1.442695
    %v1610 = vpow.pop %v1609
    %v1611 = vmul.f32 %v1606, 1.442695
    %v1612 = vpow.pop %v1611
    %v1613 = vsel %vm1258, %v1608, 0.0
    %v1614 = vsel %vm1259, %v1610, 0.0
    %v1615 = vsel %vm1260, %v1612, 0.0
    %v1616 = vsel %vm592, %v1613, 0.0
    %1617 = vadd.xlane.f32.xlu0 %v1616
    %v1618 = vpop.xlane.xlu0 %1617
    %v1619 = vsel %vm592, %v1614, 0.0
    %1620 = vadd.xlane.f32.xlu0 %v1619
    %v1621 = vpop.xlane.xlu0 %1620
    %v1622 = vsel %vm592, %v1615, 0.0
    %1623 = vadd.xlane.f32.xlu0 %v1622
    %v1624 = vpop.xlane.xlu0 %1623
    %v1625 = vmax.f32 %v1618, 1e-16
    %v1626 = vmax.f32 %v1621, 1e-16
    %v1627 = vmax.f32 %v1624, 1e-16
    %v1628 = vrcp.pop %v1625
    %v1629 = vrcp.pop %v1626
    %v1630 = vrcp.pop %v1627
    %v1631 = vmul.f32 %v1613, %v1628
    %v1632 = vmul.f32 %v1614, %v1629
    %v1633 = vmul.f32 %v1615, %v1630
    %v1634 = vpack.c.bf16 %v1632, %v1631
    %v1635 = vpack.c.bf16 %v1633, %v1633
    %v1637 = vsel %vm592, %v1634, 0
    %v1640 = vsel %vm592, %v1635, 0
    %v1642 = vsel %vm76, %v1514, 0
    %1644 = vmatprep.subr.bf16.mxu0 0
    %1645 = vmatpush1.bf16.msra.mxu0 %v1513
    %1646 = vmatprep.subr.bf16.mxu0 0
    %1647 = vmatpush1.bf16.msra.mxu0 %v1642
    %1648 = vmatprep.subr.bf16.mxu0 0
    %1649 = vmatpush1.bf16.msra.mxu0 0
    %1650 = vmatprep.subr.bf16.mxu0 0
    %1651 = vmatpush1.bf16.msra.mxu0 0
    %1652 = vmatprep.subr.bf16.mxu0 0
    %1653 = vmatpush1.bf16.msra.mxu0 0
    %1654 = vmatprep.subr.bf16.mxu0 0
    %1655 = vmatpush1.bf16.msra.mxu0 0
    %1656 = vmatprep.subr.bf16.mxu0 0
    %1657 = vmatpush1.bf16.msra.mxu0 0
    %1658 = vmatprep.subr.bf16.mxu0 0
    %1659 = vmatpush1.bf16.msra.mxu0 0
    %1660 = vmatprep.subr.bf16.mxu0 0
    %1661 = vmatpush1.bf16.msra.mxu0 0
    %1662 = vmatprep.subr.bf16.mxu0 0
    %1663 = vmatpush1.bf16.msra.mxu0 0
    %1664 = vmatprep.subr.bf16.mxu0 0
    %1665 = vmatpush1.bf16.msra.mxu0 0
    %1666 = vmatprep.subr.bf16.mxu0 0
    %1667 = vmatpush1.bf16.msra.mxu0 0
    %1668 = vmatprep.subr.bf16.mxu0 0
    %1669 = vmatpush1.bf16.msra.mxu0 0
    %1670 = vmatprep.subr.bf16.mxu0 0
    %1671 = vmatpush1.bf16.msra.mxu0 0
    %1672 = vmatprep.subr.bf16.mxu0 0
    %1673 = vmatpush1.bf16.msra.mxu0 0
    %1674 = vmatprep.subr.bf16.mxu0 0
    %1675 = vmatpush1.bf16.msra.mxu0 0
    %1676 = vmatprep.mubr.bf16.mxu0 0
    %1677 = vmatmul.mubr.bf16.gmra.mrb[0].mxu0 %v1637
    %v1678 = vpop.f32.mrb[0].mxu0
    %v1679 = vadd.f32 0.0, %v1678
    %v1680 = vpop.f32.mrb[0].mxu0
    %v1681 = vpop.f32.mrb[0].mxu0
    %v1682 = vadd.f32 0.0, %v1681
    %v1683 = vpop.f32.mrb[0].mxu0
    %1684 = vmatprep.mubr.bf16.mxu0 0
    %1685 = vmatmul.mubr.bf16.gmra.mrb[0].mxu0 %v1640
    %v1686 = vpop.f32.mrb[0].mxu0
    %v1687 = vadd.f32 0.0, %v1686
    %v1688 = vpop.f32.mrb[0].mxu0
    %v1689 = vpop.f32.mrb[0].mxu0
    %v1690 = vpop.f32.mrb[0].mxu0
    %1691 = vdwg.mxu0
    %v1692 = vsel %vm694, %v1679, 0.0
    %v1693 = vsel %vm694, %v1682, 0.0
    %v1694 = vsel %vm694, %v1687, 0.0
    %1695 = vset.pattern.permute.xlu0 1
    %1696 = vperm.xlu0 %1695, %v484
    %v1697 = vpop.permute.xlu0 %1696
    %1699 = vset.pattern.permute.xlu0 1
    %1700 = vperm.xlu0 %1699, %v489
    %v1701 = vpop.permute.xlu0 %1700
    %1703 = vset.pattern.permute.xlu0 1
    %1704 = vperm.xlu0 %1703, %v492
    %v1705 = vpop.permute.xlu0 %1704
    %v1707 = vlaneseq
    %v1708 = vshrl.u32 %v1707, 7
    %v1709 = vsub.s32 1, %v1708
    %v1710 = vrot.slane %v1556, %v1709
    %v1711 = vadd.f32 %v1697, %v1710
    %v1712 = vadd.f32 %v1701, %v1710
    %v1713 = vadd.f32 %v1705, %v1710
    %vm1714 = vcmp.gt.f32.partialorder %v1711, 0.0
    %vm1715 = vcmp.gt.f32.partialorder %v1712, 0.0
    %vm1716 = vcmp.gt.f32.partialorder %v1713, 0.0
    %v1717 = vmul.f32 %v1711, 0.2
    %v1718 = vmul.f32 %v1712, 0.2
    %v1719 = vmul.f32 %v1713, 0.2
    %v1720 = vsel %vm1714, %v1711, %v1717
    %v1721 = vsel %vm1715, %v1712, %v1718
    %v1722 = vsel %vm1716, %v1713, %v1719
    %v1723 = vsel %vm1258, %v1720, -1e+30
    %v1724 = vsel %vm1259, %v1721, -1e+30
    %v1725 = vsel %vm1260, %v1722, -1e+30
    %v1726 = vsel %vm592, %v1723, -inf
    %1727 = vmax.xlane.f32.xlu0 %v1726
    %v1728 = vpop.xlane.xlu0 %1727
    %v1729 = vsel %vm592, %v1724, -inf
    %1730 = vmax.xlane.f32.xlu0 %v1729
    %v1731 = vpop.xlane.xlu0 %1730
    %v1732 = vsel %vm592, %v1725, -inf
    %1733 = vmax.xlane.f32.xlu0 %v1732
    %v1734 = vpop.xlane.xlu0 %1733
    %v1735 = vsub.f32 %v1723, %v1728
    %v1736 = vsub.f32 %v1724, %v1731
    %v1737 = vsub.f32 %v1725, %v1734
    %v1738 = vmul.f32 %v1735, 1.442695
    %v1739 = vpow.pop %v1738
    %v1740 = vmul.f32 %v1736, 1.442695
    %v1741 = vpow.pop %v1740
    %v1742 = vmul.f32 %v1737, 1.442695
    %v1743 = vpow.pop %v1742
    %v1744 = vsel %vm1258, %v1739, 0.0
    %v1745 = vsel %vm1259, %v1741, 0.0
    %v1746 = vsel %vm1260, %v1743, 0.0
    %v1747 = vsel %vm592, %v1744, 0.0
    %1748 = vadd.xlane.f32.xlu0 %v1747
    %v1749 = vpop.xlane.xlu0 %1748
    %v1750 = vsel %vm592, %v1745, 0.0
    %1751 = vadd.xlane.f32.xlu0 %v1750
    %v1752 = vpop.xlane.xlu0 %1751
    %v1753 = vsel %vm592, %v1746, 0.0
    %1754 = vadd.xlane.f32.xlu0 %v1753
    %v1755 = vpop.xlane.xlu0 %1754
    %v1756 = vmax.f32 %v1749, 1e-16
    %v1757 = vmax.f32 %v1752, 1e-16
    %v1758 = vmax.f32 %v1755, 1e-16
    %v1759 = vrcp.pop %v1756
    %v1760 = vrcp.pop %v1757
    %v1761 = vrcp.pop %v1758
    %v1762 = vmul.f32 %v1744, %v1759
    %v1763 = vmul.f32 %v1745, %v1760
    %v1764 = vmul.f32 %v1746, %v1761
    %v1765 = vpack.c.bf16 %v1763, %v1762
    %v1766 = vpack.c.bf16 %v1764, %v1764
    %v1768 = vsel %vm592, %v1765, 0
    %v1771 = vsel %vm592, %v1766, 0
    %1773 = vmatprep.subr.bf16.mxu0 0
    %1774 = vmatpush1.bf16.msra.mxu0 %v1513
    %1775 = vmatprep.subr.bf16.mxu0 0
    %1776 = vmatpush1.bf16.msra.mxu0 %v1642
    %1777 = vmatprep.subr.bf16.mxu0 0
    %1778 = vmatpush1.bf16.msra.mxu0 0
    %1779 = vmatprep.subr.bf16.mxu0 0
    %1780 = vmatpush1.bf16.msra.mxu0 0
    %1781 = vmatprep.subr.bf16.mxu0 0
    %1782 = vmatpush1.bf16.msra.mxu0 0
    %1783 = vmatprep.subr.bf16.mxu0 0
    %1784 = vmatpush1.bf16.msra.mxu0 0
    %1785 = vmatprep.subr.bf16.mxu0 0
    %1786 = vmatpush1.bf16.msra.mxu0 0
    %1787 = vmatprep.subr.bf16.mxu0 0
    %1788 = vmatpush1.bf16.msra.mxu0 0
    %1789 = vmatprep.subr.bf16.mxu0 0
    %1790 = vmatpush1.bf16.msra.mxu0 0
    %1791 = vmatprep.subr.bf16.mxu0 0
    %1792 = vmatpush1.bf16.msra.mxu0 0
    %1793 = vmatprep.subr.bf16.mxu0 0
    %1794 = vmatpush1.bf16.msra.mxu0 0
    %1795 = vmatprep.subr.bf16.mxu0 0
    %1796 = vmatpush1.bf16.msra.mxu0 0
    %1797 = vmatprep.subr.bf16.mxu0 0
    %1798 = vmatpush1.bf16.msra.mxu0 0
    %1799 = vmatprep.subr.bf16.mxu0 0
    %1800 = vmatpush1.bf16.msra.mxu0 0
    %1801 = vmatprep.subr.bf16.mxu0 0
    %1802 = vmatpush1.bf16.msra.mxu0 0
    %1803 = vmatprep.subr.bf16.mxu0 0
    %1804 = vmatpush1.bf16.msra.mxu0 0
    %1805 = vmatprep.mubr.bf16.mxu0 0
    %1806 = vmatmul.mubr.bf16.gmra.mrb[0].mxu0 %v1768
    %v1807 = vpop.f32.mrb[0].mxu0
    %v1808 = vadd.f32 0.0, %v1807
    %v1809 = vpop.f32.mrb[0].mxu0
    %v1810 = vpop.f32.mrb[0].mxu0
    %v1811 = vadd.f32 0.0, %v1810
    %v1812 = vpop.f32.mrb[0].mxu0
    %1813 = vmatprep.mubr.bf16.mxu0 0
    %1814 = vmatmul.mubr.bf16.gmra.mrb[0].mxu0 %v1771
    %v1815 = vpop.f32.mrb[0].mxu0
    %v1816 = vadd.f32 0.0, %v1815
    %v1817 = vpop.f32.mrb[0].mxu0
    %v1818 = vpop.f32.mrb[0].mxu0
    %v1819 = vpop.f32.mrb[0].mxu0
    %1820 = vdwg.mxu0
    %v1821 = vsel %vm828, %v1808, %v1692
    %v1822 = vsel %vm828, %v1811, %v1693
    %v1823 = vsel %vm828, %v1816, %v1694
    %v1824 = vadd.f32 %v1821, %v1496
    %v1825 = vadd.f32 %v1822, %v1496
    %v1826 = vadd.f32 %v1823, %v1496
    %vm1827 = vcmp.ge.f32.partialorder %v1824, 0.0
    %vm1828 = vcmp.ge.f32.partialorder %v1825, 0.0
    %vm1829 = vcmp.ge.f32.partialorder %v1826, 0.0
    %v1830 = vmul.f32 %v1506, %v1824
    %v1831 = vmul.f32 %v1506, %v1825
    %v1832 = vmul.f32 %v1506, %v1826
    %v1833 = vsel %vm1827, %v1824, %v1830
    %v1834 = vsel %vm1828, %v1825, %v1831
    %v1835 = vsel %vm1829, %v1826, %v1832
    %1839 = vrot.lane.b32.xlu0 %v849, 32
    %v1840 = vpop.permute.xlu0 %1839
    %1841 = vrot.lane.b32.xlu0 %v850, 32
    %v1842 = vpop.permute.xlu0 %1841
    %1843 = vrot.lane.b32.xlu0 %v851, 32
    %v1844 = vpop.permute.xlu0 %1843
    %1851 = vrot.lane.b32.xlu0 %v1833, 64
    %v1852 = vpop.permute.xlu0 %1851
    %1853 = vrot.lane.b32.xlu0 %v1834, 64
    %v1854 = vpop.permute.xlu0 %1853
    %1855 = vrot.lane.b32.xlu0 %v1835, 64
    %v1856 = vpop.permute.xlu0 %1855
    %1863 = vrot.lane.b32.xlu0 %v1172, 96
    %v1864 = vpop.permute.xlu0 %1863
    %1865 = vrot.lane.b32.xlu0 %v1173, 96
    %v1866 = vpop.permute.xlu0 %1865
    %1867 = vrot.lane.b32.xlu0 %v1174, 96
    %v1868 = vpop.permute.xlu0 %1867
    %v1872 = vsel %vm229, %v1510, %v1840
    %v1873 = vsel %vm229, %v1511, %v1842
    %v1874 = vsel %vm229, %v1512, %v1844
    %vm1875 = vcmask 523264
    %v1876 = vsel %vm1875, %v1872, %v1852
    %v1877 = vsel %vm1875, %v1873, %v1854
    %v1878 = vsel %vm1875, %v1874, %v1856
    %vm1879 = vcmask 785408
    %v1880 = vsel %vm1879, %v1876, %v1864
    %v1881 = vsel %vm1879, %v1877, %v1866
    %v1882 = vsel %vm1879, %v1878, %v1868
    %1883 = vst [vmem:[%s10] sm:$0xff] %v1880
    %1884 = vst [vmem:[%s10 + $0x8] sm:$0xff] %v1881
    %1885 = vst [vmem:[%s10 + $0x10] sm:$0xff] %v1882
    %v1886 = vlaneseq
    %v1887 = vshrl.u32 %v1886, 7
    %v1888 = vadd.s32 %v1887, 8
    %v1889 = vadd.s32 %v1887, 16
    %vm1890 = vcmp.lt.s32.totalorder %v1887, 16
    %vm1891 = vcmp.lt.s32.totalorder %v1888, 16
    %vm1892 = vcmp.lt.s32.totalorder %v1889, 16
    %v1893 = vsel %vm1890, 0.0625, 0.0
    %v1894 = vsel %vm1891, 0.0625, 0.0
    %v1895 = vsel %vm1892, 0.0625, 0.0
    %vm1896 = vcmp.lt.s32.totalorder %v1887, 24
    %vm1897 = vcmp.lt.s32.totalorder %v1888, 24
    %vm1898 = vcmp.lt.s32.totalorder %v1889, 24
    %v1899 = vsel %vm1896, 0.041666668, 0.0
    %v1900 = vsel %vm1897, 0.041666668, 0.0
    %v1901 = vsel %vm1898, 0.041666668, 0.0
    %v1902 = vmul.f32 %v1510, %v1893
    %v1903 = vmul.f32 %v1511, %v1894
    %v1904 = vmul.f32 %v1512, %v1895
    %v1905 = vsel %vm229, %v1902, 0.0
    %v1906 = vsel %vm229, %v1903, 0.0
    %v1907 = vadd.f32 %v1905, %v1906
    %v1908 = vsel %vm229, %v1904, 0.0
    %v1909 = vadd.f32 %v1907, %v1908
    %v1910 = vrot.slane %v1909, 4
    %v1911 = vadd.f32 %v1909, %v1910
    %v1912 = vrot.slane %v1911, 2
    %v1913 = vadd.f32 %v1911, %v1912
    %v1914 = vrot.slane %v1913, 1
    %v1915 = vadd.f32 %v1913, %v1914
    %v1916 = vmul.f32 %v849, %v1899
    %v1917 = vmul.f32 %v850, %v1900
    %v1918 = vmul.f32 %v851, %v1901
    %v1919 = vsel %vm229, %v1916, 0.0
    %v1920 = vsel %vm229, %v1917, 0.0
    %v1921 = vadd.f32 %v1919, %v1920
    %v1922 = vsel %vm229, %v1918, 0.0
    %v1923 = vadd.f32 %v1921, %v1922
    %v1924 = vrot.slane %v1923, 4
    %v1925 = vadd.f32 %v1923, %v1924
    %v1926 = vrot.slane %v1925, 2
    %v1927 = vadd.f32 %v1925, %v1926
    %v1928 = vrot.slane %v1927, 1
    %v1929 = vadd.f32 %v1927, %v1928
    %v1930 = vadd.f32 %v1915, %v1929
    %v1931 = vmul.f32 %v1930, 0.5
    %v1932 = vsub.f32 0.0, %v1931
    %v1933 = vmul.f32 %v1932, 1.442695
    %v1934 = vpow.pop %v1933
    %v1935 = vadd.f32 %v1934, 1.0
    %v1936 = vrcp.pop %v1935
    %v1937 = vmul.f32 1.0, %v1936
    %vm1938 = vcmask 253952
    %1939 = vst.msk [vmem:[#allocation2] sm:$0x1] %vm1938, %v1937
    // Predicated region
    $region42: #{lant_model_forward.1} parent=1 // pred_check
      _
    $region43: #{lant_model_forward.1} parent=1 // pred_check_branch
      %1941 = sbr.rel (0) target = $region45
    $region44: #{lant_model_forward.1} parent=1 // pred_region
      _
    $region45: #{lant_model_forward.1} parent=1 // pred_fallthru
      _
    // Predicated region
    $region46: #{lant_model_forward.1} parent=1 // pred_check
      _
    $region47: #{lant_model_forward.1} parent=1 // pred_check_branch
      %1943 = sbr.rel (0) target = $region49
    $region48: #{lant_model_forward.1} parent=1 // pred_region
      %s1945 = ssub.s32 16, 16
      %1946 = vsyncadd [#allocation3], %s1945
      %s1948 = sshll.u32 [#allocation2], 4
      %s1949 = int_to_ptr.vmem [resolvable:$true] %s1948
      %1951 = dma.vmem_to_hbm [thread:$0]  %s1949, 16, %s11, [#allocation3]
    $region49: #{lant_model_forward.1} parent=1 // pred_fallthru
      _
    // Predicated region
    $region50: #{lant_model_forward.1} parent=1 // pred_check
      _
    $region51: #{lant_model_forward.1} parent=1 // pred_check_branch
      %1953 = sbr.rel (0) target = $region53
    $region52: #{lant_model_forward.1} parent=1 // pred_region
      _
    $region53: #{lant_model_forward.1} parent=1 // pred_fallthru
      _
    // Predicated region
    $region54: #{lant_model_forward.1} parent=1 // pred_check
      _
    $region55: #{lant_model_forward.1} parent=1 // pred_check_branch
      %1955 = sbr.rel (0) target = $region57
    $region56: #{lant_model_forward.1} parent=1 // pred_region
      %1956 = dma.done [#allocation3], 16
    $region57: #{lant_model_forward.1} parent=1 // pred_fallthru
      _
    %1957 = vsyncpa [#allocation3], 1

</llo_original>
